<compile_context>
chip_gen: v7x
topology: tpu7x:2x2x1
jax: 0.10.0
libtpu: 0.0.40
codegen_flags: <defaults>
</compile_context>

<pallas_src>
import jax
import jax.numpy as jnp
from jax.experimental import pallas as pl
from jax.experimental.pallas import tpu as pltpu

WIN = 9
PAD = WIN // 2
EPS = 1e-5
_MAX_CHUNK = 8


# --------------------------------------------------------------------------- #
# Kernel
# --------------------------------------------------------------------------- #
def _ncc_kernel(i1_ref, i2_ref, f_ref, th_ref, tv2_ref, out_ref):
    nb, H, W = i1_ref.shape
    inv_win = 1.0 / float(WIN * WIN)

    # Resident band operands (constant index_map => DMA'd once, reused).
    t_h = th_ref[...]       # (W, W)  bf16 0/1 band: right-mul = horizontal box sum
    t_v2 = tv2_ref[...]     # (H, 2H) bf16 [T_v | T_v]: left-mul of [hi; lo]

    def hi_lo(x):
        # Exact two-term bf16 decomposition of f32: x == hi + lo up to ~2^-17
        # relative, so single-pass bf16 matmuls reproduce the f32 reference
        # box sums (cancellation in the variances stays at f32 level).
        hi = x.astype(jnp.bfloat16)
        lo = (x - hi.astype(jnp.float32)).astype(jnp.bfloat16)
        return hi, lo

    def box_all(planes):
        """9x9 zero-padded box sums of P (H, W) f32 planes via banded matmuls."""
        P = len(planes)
        parts = [hi_lo(p) for p in planes]
        his = [p[0] for p in parts]
        los = [p[1] for p in parts]
        # Horizontal pass: one stacked single-pass bf16 matmul for all planes.
        xh = jnp.concatenate(his + los, axis=0)                  # (2*P*H, W) bf16
        r = jnp.dot(xh, t_h, preferred_element_type=jnp.float32)  # (2*P*H, W) f32
        hsum = r[:P * H] + r[P * H:]                              # (P*H, W) f32
        # Vertical pass: one (H, 2H) @ (2H, W) matmul per plane (hi/lo folded
        # into the contraction axis by the doubled [T_v | T_v] operand).
        outs = []
        for p in range(P):
            vhi, vlo = hi_lo(hsum[p * H:(p + 1) * H])
            xv = jnp.concatenate([vhi, vlo], axis=0)              # (2H, W) bf16
            outs.append(jnp.dot(t_v2, xv, preferred_element_type=jnp.float32))
        return outs                                               # P x (H, W) f32

    def image_rowsum(b):
        """Combined per-pixel loss of image b, pre-reduced over rows -> (1, W)."""
        img1 = i1_ref[b].astype(jnp.float32)
        img2 = i2_ref[b].astype(jnp.float32)
        fus = f_ref[b].astype(jnp.float32)

        # 8 statistic planes; fusion stats computed once, shared by both pairs.
        A, B, C1, D1, E1, C2, D2, E2 = box_all(
            [fus, fus * fus,
             img1, img1 * img1, img1 * fus,
             img2, img2 * img2, img2 * fus])

        # f_var = J2_sum - J_sum^2/win  (identical to the reference algebra).
        f_var = jnp.maximum(B - A * A * inv_win, 0.0)

        def pair(i_sum, i2_sum, if_sum):
            cross = if_sum - i_sum * A * inv_win
            i_var = jnp.maximum(i2_sum - i_sum * i_sum * inv_win, 0.0)
            cc = cross * cross * pl.reciprocal(i_var * f_var + EPS, approx=True)
            return 1.0 - cc

        combined = (pair(C1, D1, E1) + pair(C2, D2, E2)) * 0.5
        return jnp.sum(combined, axis=0, keepdims=True)            # (1, W)

    if nb == 1:
        rows = image_rowsum(0)
    else:
        # fori_loop (not a static unroll) so only one image's intermediates
        # are live at a time.
        rows = jax.lax.fori_loop(
            0, nb, lambda b, acc: acc + image_rowsum(b),
            jnp.zeros((1, W), jnp.float32))

    total = jnp.sum(rows)
    # Lane/sublane-aligned output tile (unmasked vst); wrapper reads [g, 0, 0].
    out_ref[...] = jnp.full((1, 8, 128), total, dtype=jnp.float32)


# --------------------------------------------------------------------------- #
# Wrapper
# --------------------------------------------------------------------------- #
def _band_bf16(n):
    """(n, n) 0/1 band of half-width PAD; clipped band == zero-padded conv."""
    r = jax.lax.broadcasted_iota(jnp.int32, (n, n), 0)
    c = jax.lax.broadcasted_iota(jnp.int32, (n, n), 1)
    return (jnp.abs(r - c) <= PAD).astype(jnp.bfloat16)


def _vmem_limit_bytes():
    cap = 128 * 1024 * 1024
    try:
        info = pltpu.get_tpu_info()
        cap = int(getattr(info, "vmem_capacity_bytes", cap) or cap)
    except Exception:
        pass
    if cap <= 80 * 1024 * 1024:          # v7x-class: 64 MiB per TensorCore
        return 40 * 1024 * 1024
    return 96 * 1024 * 1024              # v5e / v6e: 128 MiB physical VMEM


def _pick_chunk(n, h, w, in_dtype, vmem_limit):
    """Images per grid step.  >=256^2 images always go one-per-step (per-step
    overhead ~0.35us is negligible, live ranges stay bounded, megacore gets N
    parallel steps).  Tiny images are chunked, within a conservative budget."""
    if n <= 1 or h * w >= 256 * 256:
        return 1
    plane = h * w
    itemsize = jnp.dtype(in_dtype).itemsize
    bands = 2 * (w * w + 2 * h * h) * 2          # double-buffered bf16 bands
    work = 48 * plane * 4                        # ~per-image f32 intermediates
    budget = int(vmem_limit * 0.6) - bands - work
    per_image_io = 2 * 3 * plane * itemsize      # 3 inputs, double-buffered
    nb = max(1, min(_MAX_CHUNK, budget // max(per_image_io, 1)))
    nb = min(nb, max(1, n // 2))                 # keep >= 2 grid steps (megacore)
    nb = max(nb, 1)
    while n % nb:
        nb -= 1
    return nb


def ncc_loss2(img1, img2, fusion_img, reduction="mean", loss_weight=1.0):
    """JAX/Pallas equivalent of NCCLoss2.forward (win_size=9)."""
    N, C, H, W = img1.shape
    assert C == 1, "NCCLoss2's (1,1,9,9) box filter assumes a single channel"

    # Channel squeeze only (free reshape): each input crosses HBM exactly once,
    # in its original dtype; the f32 cast happens per tile inside the kernel.
    i1 = img1.reshape(N, H, W)
    i2 = img2.reshape(N, H, W)
    fu = fusion_img.reshape(N, H, W)

    t_h = _band_bf16(W)                                   # (W, W)
    t_v2 = jnp.concatenate([_band_bf16(H)] * 2, axis=1)   # (H, 2H) = [T_v | T_v]

    vlim = _vmem_limit_bytes()
    nb = _pick_chunk(N, H, W, img1.dtype, vlim)
    n_chunks = N // nb

    # TODO(synk): for >=1024^2 images the dense banded matmuls waste >95% of
    # MACs and the per-image f32 working set outgrows v7x's 64 MiB VMEM; that
    # regime needs the block-banded T (only the 3 adjacent 128-wide blocks)
    # plus row tiling with a 2*PAD halo — not implemented here.

    per_chunk = pl.pallas_call(
        _ncc_kernel,
        out_shape=jax.ShapeDtypeStruct((n_chunks, 8, 128), jnp.float32),
        grid_spec=pltpu.PrefetchScalarGridSpec(
            num_scalar_prefetch=0,
            grid=(n_chunks,),
            in_specs=[
                pl.BlockSpec((nb, H, W), lambda g: (g, 0, 0)),
                pl.BlockSpec((nb, H, W), lambda g: (g, 0, 0)),
                pl.BlockSpec((nb, H, W), lambda g: (g, 0, 0)),
                pl.BlockSpec((W, W), lambda g: (0, 0)),        # resident band
                pl.BlockSpec((H, 2 * H), lambda g: (0, 0)),    # resident band
            ],
            out_specs=pl.BlockSpec((1, 8, 128), lambda g: (g, 0, 0)),
        ),
        compiler_params=pltpu.CompilerParams(
            dimension_semantics=("parallel",),
            vmem_limit_bytes=vlim),
    )(i1, i2, fu, t_h, t_v2)

    total = jnp.sum(per_chunk[:, 0, 0])
    if reduction == "mean":
        loss = total / (N * C * H * W)
    elif reduction == "sum":
        loss = total
    else:
        # TODO(synk): reduction='none' (per-pixel loss map output) is not wired
        # through the reducing kernel; only 'mean'/'sum' supported.
        raise NotImplementedError("reduction='none' not implemented")
    return loss * loss_weight


# --------------------------------------------------------------------------- #
# Pure-JAX reference (validation)
# --------------------------------------------------------------------------- #
def _ref_loss(img1, img2, fusion_img, loss_weight=1.0):
    filt = jnp.ones((1, 1, WIN, WIN), jnp.float32)

    def conv(x):
        return jax.lax.conv_general_dilated(
            x.astype(jnp.float32), filt, (1, 1),
            [(PAD, PAD), (PAD, PAD)],
            dimension_numbers=("NCHW", "OIHW", "NCHW"),
            precision=jax.lax.Precision.HIGHEST)

    def compute_loss(I, J):
        win_size = float(WIN * WIN)
        I_sum, J_sum = conv(I), conv(J)
        I2_sum, J2_sum, IJ_sum = conv(I * I), conv(J * J), conv(I * J)
        u_I, u_J = I_sum / win_size, J_sum / win_size
        cross = IJ_sum - u_J * I_sum - u_I * J_sum + u_I * u_J * win_size
        I_var = I2_sum - 2 * u_I * I_sum + u_I * u_I * win_size
        J_var = J2_sum - 2 * u_J * J_sum + u_J * u_J * win_size
        cc = cross * cross / (I_var * J_var + EPS)
        return 1.0 - cc

    combined = (compute_loss(img1, fusion_img)
                + compute_loss(img2, fusion_img)) / 2.0
    return jnp.mean(combined) * loss_weight


if __name__ == "__main__":
    key = jax.random.PRNGKey(0)

    def snap(x):
        # 1/16-grid values: pixel products are exact in bf16, so the kernel's
        # hi/lo-split box sums match the f32 reference exactly; the only
        # kernel/reference delta is the EUP approx reciprocal (~1e-4 relative).
        return jnp.floor(x * 16.0) / 16.0

    def make_inputs(k, n, h, w):
        k1, k2, k3 = jax.random.split(k, 3)
        a = snap(jax.random.uniform(k1, (n, 1, h, w), dtype=jnp.float32))
        b = snap(jax.random.uniform(k2, (n, 1, h, w), dtype=jnp.float32))
        f = snap(0.4 * a + 0.4 * b
                 + 0.2 * jax.random.uniform(k3, (n, 1, h, w), dtype=jnp.float32))
        return a, b, f

    ka, kb = jax.random.split(key)

    # Case 1: one image per grid step (nb=1), two megacore-parallel grid steps.
    a1, a2, af = make_inputs(ka, 2, 16, 16)
    loss_a = ncc_loss2(a1, a2, af)
    jax.block_until_ready(loss_a)
    ref_a = _ref_loss(a1, a2, af)
    assert abs(float(loss_a) - float(ref_a)) < 2e-3, (float(loss_a), float(ref_a))

    # Case 2: tiny-image chunking path (nb=2) walked with lax.fori_loop.
    b1, b2, bf = make_inputs(kb, 4, 16, 16)
    loss_b = ncc_loss2(b1, b2, bf)
    jax.block_until_ready(loss_b)
    ref_b = _ref_loss(b1, b2, bf)
    assert abs(float(loss_b) - float(ref_b)) < 2e-3, (float(loss_b), float(ref_b))

    print("KERNEL_OK")
</pallas_src>

<mosaic_0001>
module attributes {stable_mosaic.version = 11 : i64} {
  func.func @_ncc_kernel(%arg0: i32, %arg1: memref<1x16x16xf32, #tpu.memory_space<vmem>>, %arg2: memref<1x16x16xf32, #tpu.memory_space<vmem>>, %arg3: memref<1x16x16xf32, #tpu.memory_space<vmem>>, %arg4: memref<16x16xbf16, #tpu.memory_space<vmem>>, %arg5: memref<16x32xbf16, #tpu.memory_space<vmem>>, %arg6: memref<1x8x128xf32, #tpu.memory_space<vmem>>) attributes {dimension_semantics = [#tpu.dimension_semantics<parallel>], iteration_bounds = array<i64: 2>, scalar_prefetch = 0 : i64, scratch_operands = 0 : i64, tpu.core_type = #tpu.core_type<tc>, window_params = [{transform_indices = @transform_0, window_bounds = array<i64: 1, 16, 16>}, {transform_indices = @transform_1, window_bounds = array<i64: 1, 16, 16>}, {transform_indices = @transform_2, window_bounds = array<i64: 1, 16, 16>}, {pipeline_mode = #tpu.pipeline_mode<synchronous>, transform_indices = @transform_3, window_bounds = array<i64: 16, 16>}, {pipeline_mode = #tpu.pipeline_mode<synchronous>, transform_indices = @transform_4, window_bounds = array<i64: 16, 32>}, {transform_indices = @transform_5, window_bounds = array<i64: 1, 8, 128>}]} {
    %c0 = arith.constant 0 : index
    %c0_0 = arith.constant 0 : index
    %0 = vector.load %arg4[%c0, %c0_0] : memref<16x16xbf16, #tpu.memory_space<vmem>>, vector<16x16xbf16>
    %c0_1 = arith.constant 0 : index
    %c0_2 = arith.constant 0 : index
    %1 = vector.load %arg5[%c0_1, %c0_2] : memref<16x32xbf16, #tpu.memory_space<vmem>>, vector<16x32xbf16>
    %c0_3 = arith.constant 0 : index
    %c0_4 = arith.constant 0 : index
    %c0_5 = arith.constant 0 : index
    %2 = vector.load %arg1[%c0_3, %c0_4, %c0_5] : memref<1x16x16xf32, #tpu.memory_space<vmem>>, vector<1x16x16xf32>
    %3 = vector.shape_cast %2 : vector<1x16x16xf32> to vector<16x16xf32>
    %c0_6 = arith.constant 0 : index
    %c0_7 = arith.constant 0 : index
    %c0_8 = arith.constant 0 : index
    %4 = vector.load %arg2[%c0_6, %c0_7, %c0_8] : memref<1x16x16xf32, #tpu.memory_space<vmem>>, vector<1x16x16xf32>
    %5 = vector.shape_cast %4 : vector<1x16x16xf32> to vector<16x16xf32>
    %c0_9 = arith.constant 0 : index
    %c0_10 = arith.constant 0 : index
    %c0_11 = arith.constant 0 : index
    %6 = vector.load %arg3[%c0_9, %c0_10, %c0_11] : memref<1x16x16xf32, #tpu.memory_space<vmem>>, vector<1x16x16xf32>
    %7 = vector.shape_cast %6 : vector<1x16x16xf32> to vector<16x16xf32>
    %8 = arith.mulf %7, %7 : vector<16x16xf32>
    %9 = arith.mulf %3, %3 : vector<16x16xf32>
    %10 = arith.mulf %3, %7 : vector<16x16xf32>
    %11 = arith.mulf %5, %5 : vector<16x16xf32>
    %12 = arith.mulf %5, %7 : vector<16x16xf32>
    %13 = arith.truncf %7 : vector<16x16xf32> to vector<16x16xbf16>
    %14 = arith.extf %13 : vector<16x16xbf16> to vector<16x16xf32>
    %15 = arith.subf %7, %14 : vector<16x16xf32>
    %16 = arith.truncf %15 : vector<16x16xf32> to vector<16x16xbf16>
    %17 = arith.truncf %8 : vector<16x16xf32> to vector<16x16xbf16>
    %18 = arith.extf %17 : vector<16x16xbf16> to vector<16x16xf32>
    %19 = arith.subf %8, %18 : vector<16x16xf32>
    %20 = arith.truncf %19 : vector<16x16xf32> to vector<16x16xbf16>
    %21 = arith.truncf %3 : vector<16x16xf32> to vector<16x16xbf16>
    %22 = arith.extf %21 : vector<16x16xbf16> to vector<16x16xf32>
    %23 = arith.subf %3, %22 : vector<16x16xf32>
    %24 = arith.truncf %23 : vector<16x16xf32> to vector<16x16xbf16>
    %25 = arith.truncf %9 : vector<16x16xf32> to vector<16x16xbf16>
    %26 = arith.extf %25 : vector<16x16xbf16> to vector<16x16xf32>
    %27 = arith.subf %9, %26 : vector<16x16xf32>
    %28 = arith.truncf %27 : vector<16x16xf32> to vector<16x16xbf16>
    %29 = arith.truncf %10 : vector<16x16xf32> to vector<16x16xbf16>
    %30 = arith.extf %29 : vector<16x16xbf16> to vector<16x16xf32>
    %31 = arith.subf %10, %30 : vector<16x16xf32>
    %32 = arith.truncf %31 : vector<16x16xf32> to vector<16x16xbf16>
    %33 = arith.truncf %5 : vector<16x16xf32> to vector<16x16xbf16>
    %34 = arith.extf %33 : vector<16x16xbf16> to vector<16x16xf32>
    %35 = arith.subf %5, %34 : vector<16x16xf32>
    %36 = arith.truncf %35 : vector<16x16xf32> to vector<16x16xbf16>
    %37 = arith.truncf %11 : vector<16x16xf32> to vector<16x16xbf16>
    %38 = arith.extf %37 : vector<16x16xbf16> to vector<16x16xf32>
    %39 = arith.subf %11, %38 : vector<16x16xf32>
    %40 = arith.truncf %39 : vector<16x16xf32> to vector<16x16xbf16>
    %41 = arith.truncf %12 : vector<16x16xf32> to vector<16x16xbf16>
    %42 = arith.extf %41 : vector<16x16xbf16> to vector<16x16xf32>
    %43 = arith.subf %12, %42 : vector<16x16xf32>
    %44 = arith.truncf %43 : vector<16x16xf32> to vector<16x16xbf16>
    %45 = tpu.concatenate %13, %17, %21, %25, %29, %33, %37, %41, %16, %20, %24, %28, %32, %36, %40, %44 in 0 : vector<16x16xbf16>, vector<16x16xbf16>, vector<16x16xbf16>, vector<16x16xbf16>, vector<16x16xbf16>, vector<16x16xbf16>, vector<16x16xbf16>, vector<16x16xbf16>, vector<16x16xbf16>, vector<16x16xbf16>, vector<16x16xbf16>, vector<16x16xbf16>, vector<16x16xbf16>, vector<16x16xbf16>, vector<16x16xbf16>, vector<16x16xbf16> -> vector<256x16xbf16>
    %cst = arith.constant dense<0.000000e+00> : vector<256x16xf32>
    %46 = tpu.matmul %45, %0, %cst {dimension_numbers = #tpu.dot_dimension_numbers<[1], [0], [0], [1], [0, 0, 1, 1], [], []>} : vector<256x16xbf16>, vector<16x16xbf16>, vector<256x16xf32> -> vector<256x16xf32>
    %47 = vector.extract_strided_slice %46 {offsets = [0, 0], sizes = [128, 16], strides = [1, 1]} : vector<256x16xf32> to vector<128x16xf32>
    %48 = vector.extract_strided_slice %46 {offsets = [128, 0], sizes = [128, 16], strides = [1, 1]} : vector<256x16xf32> to vector<128x16xf32>
    %49 = arith.addf %47, %48 : vector<128x16xf32>
    %50 = vector.extract_strided_slice %49 {offsets = [0, 0], sizes = [16, 16], strides = [1, 1]} : vector<128x16xf32> to vector<16x16xf32>
    %51 = arith.truncf %50 : vector<16x16xf32> to vector<16x16xbf16>
    %52 = arith.extf %51 : vector<16x16xbf16> to vector<16x16xf32>
    %53 = arith.subf %50, %52 : vector<16x16xf32>
    %54 = arith.truncf %53 : vector<16x16xf32> to vector<16x16xbf16>
    %55 = tpu.concatenate %51, %54 in 0 : vector<16x16xbf16>, vector<16x16xbf16> -> vector<32x16xbf16>
    %cst_12 = arith.constant dense<0.000000e+00> : vector<16x16xf32>
    %56 = tpu.matmul %1, %55, %cst_12 {dimension_numbers = #tpu.dot_dimension_numbers<[1], [0], [0], [1], [0, 0, 1, 1], [], []>} : vector<16x32xbf16>, vector<32x16xbf16>, vector<16x16xf32> -> vector<16x16xf32>
    %57 = vector.extract_strided_slice %49 {offsets = [16, 0], sizes = [16, 16], strides = [1, 1]} : vector<128x16xf32> to vector<16x16xf32>
    %58 = arith.truncf %57 : vector<16x16xf32> to vector<16x16xbf16>
    %59 = arith.extf %58 : vector<16x16xbf16> to vector<16x16xf32>
    %60 = arith.subf %57, %59 : vector<16x16xf32>
    %61 = arith.truncf %60 : vector<16x16xf32> to vector<16x16xbf16>
    %62 = tpu.concatenate %58, %61 in 0 : vector<16x16xbf16>, vector<16x16xbf16> -> vector<32x16xbf16>
    %cst_13 = arith.constant dense<0.000000e+00> : vector<16x16xf32>
    %63 = tpu.matmul %1, %62, %cst_13 {dimension_numbers = #tpu.dot_dimension_numbers<[1], [0], [0], [1], [0, 0, 1, 1], [], []>} : vector<16x32xbf16>, vector<32x16xbf16>, vector<16x16xf32> -> vector<16x16xf32>
    %64 = vector.extract_strided_slice %49 {offsets = [32, 0], sizes = [16, 16], strides = [1, 1]} : vector<128x16xf32> to vector<16x16xf32>
    %65 = arith.truncf %64 : vector<16x16xf32> to vector<16x16xbf16>
    %66 = arith.extf %65 : vector<16x16xbf16> to vector<16x16xf32>
    %67 = arith.subf %64, %66 : vector<16x16xf32>
    %68 = arith.truncf %67 : vector<16x16xf32> to vector<16x16xbf16>
    %69 = tpu.concatenate %65, %68 in 0 : vector<16x16xbf16>, vector<16x16xbf16> -> vector<32x16xbf16>
    %cst_14 = arith.constant dense<0.000000e+00> : vector<16x16xf32>
    %70 = tpu.matmul %1, %69, %cst_14 {dimension_numbers = #tpu.dot_dimension_numbers<[1], [0], [0], [1], [0, 0, 1, 1], [], []>} : vector<16x32xbf16>, vector<32x16xbf16>, vector<16x16xf32> -> vector<16x16xf32>
    %71 = vector.extract_strided_slice %49 {offsets = [48, 0], sizes = [16, 16], strides = [1, 1]} : vector<128x16xf32> to vector<16x16xf32>
    %72 = arith.truncf %71 : vector<16x16xf32> to vector<16x16xbf16>
    %73 = arith.extf %72 : vector<16x16xbf16> to vector<16x16xf32>
    %74 = arith.subf %71, %73 : vector<16x16xf32>
    %75 = arith.truncf %74 : vector<16x16xf32> to vector<16x16xbf16>
    %76 = tpu.concatenate %72, %75 in 0 : vector<16x16xbf16>, vector<16x16xbf16> -> vector<32x16xbf16>
    %cst_15 = arith.constant dense<0.000000e+00> : vector<16x16xf32>
    %77 = tpu.matmul %1, %76, %cst_15 {dimension_numbers = #tpu.dot_dimension_numbers<[1], [0], [0], [1], [0, 0, 1, 1], [], []>} : vector<16x32xbf16>, vector<32x16xbf16>, vector<16x16xf32> -> vector<16x16xf32>
    %78 = vector.extract_strided_slice %49 {offsets = [64, 0], sizes = [16, 16], strides = [1, 1]} : vector<128x16xf32> to vector<16x16xf32>
    %79 = arith.truncf %78 : vector<16x16xf32> to vector<16x16xbf16>
    %80 = arith.extf %79 : vector<16x16xbf16> to vector<16x16xf32>
    %81 = arith.subf %78, %80 : vector<16x16xf32>
    %82 = arith.truncf %81 : vector<16x16xf32> to vector<16x16xbf16>
    %83 = tpu.concatenate %79, %82 in 0 : vector<16x16xbf16>, vector<16x16xbf16> -> vector<32x16xbf16>
    %cst_16 = arith.constant dense<0.000000e+00> : vector<16x16xf32>
    %84 = tpu.matmul %1, %83, %cst_16 {dimension_numbers = #tpu.dot_dimension_numbers<[1], [0], [0], [1], [0, 0, 1, 1], [], []>} : vector<16x32xbf16>, vector<32x16xbf16>, vector<16x16xf32> -> vector<16x16xf32>
    %85 = vector.extract_strided_slice %49 {offsets = [80, 0], sizes = [16, 16], strides = [1, 1]} : vector<128x16xf32> to vector<16x16xf32>
    %86 = arith.truncf %85 : vector<16x16xf32> to vector<16x16xbf16>
    %87 = arith.extf %86 : vector<16x16xbf16> to vector<16x16xf32>
    %88 = arith.subf %85, %87 : vector<16x16xf32>
    %89 = arith.truncf %88 : vector<16x16xf32> to vector<16x16xbf16>
    %90 = tpu.concatenate %86, %89 in 0 : vector<16x16xbf16>, vector<16x16xbf16> -> vector<32x16xbf16>
    %cst_17 = arith.constant dense<0.000000e+00> : vector<16x16xf32>
    %91 = tpu.matmul %1, %90, %cst_17 {dimension_numbers = #tpu.dot_dimension_numbers<[1], [0], [0], [1], [0, 0, 1, 1], [], []>} : vector<16x32xbf16>, vector<32x16xbf16>, vector<16x16xf32> -> vector<16x16xf32>
    %92 = vector.extract_strided_slice %49 {offsets = [96, 0], sizes = [16, 16], strides = [1, 1]} : vector<128x16xf32> to vector<16x16xf32>
    %93 = arith.truncf %92 : vector<16x16xf32> to vector<16x16xbf16>
    %94 = arith.extf %93 : vector<16x16xbf16> to vector<16x16xf32>
    %95 = arith.subf %92, %94 : vector<16x16xf32>
    %96 = arith.truncf %95 : vector<16x16xf32> to vector<16x16xbf16>
    %97 = tpu.concatenate %93, %96 in 0 : vector<16x16xbf16>, vector<16x16xbf16> -> vector<32x16xbf16>
    %cst_18 = arith.constant dense<0.000000e+00> : vector<16x16xf32>
    %98 = tpu.matmul %1, %97, %cst_18 {dimension_numbers = #tpu.dot_dimension_numbers<[1], [0], [0], [1], [0, 0, 1, 1], [], []>} : vector<16x32xbf16>, vector<32x16xbf16>, vector<16x16xf32> -> vector<16x16xf32>
    %99 = vector.extract_strided_slice %49 {offsets = [112, 0], sizes = [16, 16], strides = [1, 1]} : vector<128x16xf32> to vector<16x16xf32>
    %100 = arith.truncf %99 : vector<16x16xf32> to vector<16x16xbf16>
    %101 = arith.extf %100 : vector<16x16xbf16> to vector<16x16xf32>
    %102 = arith.subf %99, %101 : vector<16x16xf32>
    %103 = arith.truncf %102 : vector<16x16xf32> to vector<16x16xbf16>
    %104 = tpu.concatenate %100, %103 in 0 : vector<16x16xbf16>, vector<16x16xbf16> -> vector<32x16xbf16>
    %cst_19 = arith.constant dense<0.000000e+00> : vector<16x16xf32>
    %105 = tpu.matmul %1, %104, %cst_19 {dimension_numbers = #tpu.dot_dimension_numbers<[1], [0], [0], [1], [0, 0, 1, 1], [], []>} : vector<16x32xbf16>, vector<32x16xbf16>, vector<16x16xf32> -> vector<16x16xf32>
    %106 = arith.mulf %56, %56 : vector<16x16xf32>
    %cst_20 = arith.constant 0.0123456791 : f32
    %107 = vector.broadcast %cst_20 : f32 to vector<16x16xf32>
    %108 = arith.mulf %106, %107 : vector<16x16xf32>
    %109 = arith.subf %63, %108 : vector<16x16xf32>
    %cst_21 = arith.constant 0.000000e+00 : f32
    %110 = vector.broadcast %cst_21 : f32 to vector<16x16xf32>
    %111 = arith.maximumf %109, %110 : vector<16x16xf32>
    %112 = arith.mulf %70, %56 : vector<16x16xf32>
    %cst_22 = arith.constant 0.0123456791 : f32
    %113 = vector.broadcast %cst_22 : f32 to vector<16x16xf32>
    %114 = arith.mulf %112, %113 : vector<16x16xf32>
    %115 = arith.subf %84, %114 : vector<16x16xf32>
    %116 = arith.mulf %70, %70 : vector<16x16xf32>
    %cst_23 = arith.constant 0.0123456791 : f32
    %117 = vector.broadcast %cst_23 : f32 to vector<16x16xf32>
    %118 = arith.mulf %116, %117 : vector<16x16xf32>
    %119 = arith.subf %77, %118 : vector<16x16xf32>
    %cst_24 = arith.constant 0.000000e+00 : f32
    %120 = vector.broadcast %cst_24 : f32 to vector<16x16xf32>
    %121 = arith.maximumf %119, %120 : vector<16x16xf32>
    %122 = arith.mulf %115, %115 : vector<16x16xf32>
    %123 = arith.mulf %121, %111 : vector<16x16xf32>
    %cst_25 = arith.constant 9.99999974E-6 : f32
    %124 = vector.broadcast %cst_25 : f32 to vector<16x16xf32>
    %125 = arith.addf %123, %124 : vector<16x16xf32>
    %126 = tpu.reciprocal %125 {approx = true} : vector<16x16xf32> -> vector<16x16xf32>
    %127 = arith.mulf %122, %126 : vector<16x16xf32>
    %cst_26 = arith.constant 1.000000e+00 : f32
    %128 = vector.broadcast %cst_26 : f32 to vector<16x16xf32>
    %129 = arith.subf %128, %127 : vector<16x16xf32>
    %130 = arith.mulf %91, %56 : vector<16x16xf32>
    %cst_27 = arith.constant 0.0123456791 : f32
    %131 = vector.broadcast %cst_27 : f32 to vector<16x16xf32>
    %132 = arith.mulf %130, %131 : vector<16x16xf32>
    %133 = arith.subf %105, %132 : vector<16x16xf32>
    %134 = arith.mulf %91, %91 : vector<16x16xf32>
    %cst_28 = arith.constant 0.0123456791 : f32
    %135 = vector.broadcast %cst_28 : f32 to vector<16x16xf32>
    %136 = arith.mulf %134, %135 : vector<16x16xf32>
    %137 = arith.subf %98, %136 : vector<16x16xf32>
    %cst_29 = arith.constant 0.000000e+00 : f32
    %138 = vector.broadcast %cst_29 : f32 to vector<16x16xf32>
    %139 = arith.maximumf %137, %138 : vector<16x16xf32>
    %140 = arith.mulf %133, %133 : vector<16x16xf32>
    %141 = arith.mulf %139, %111 : vector<16x16xf32>
    %cst_30 = arith.constant 9.99999974E-6 : f32
    %142 = vector.broadcast %cst_30 : f32 to vector<16x16xf32>
    %143 = arith.addf %141, %142 : vector<16x16xf32>
    %144 = tpu.reciprocal %143 {approx = true} : vector<16x16xf32> -> vector<16x16xf32>
    %145 = arith.mulf %140, %144 : vector<16x16xf32>
    %cst_31 = arith.constant 1.000000e+00 : f32
    %146 = vector.broadcast %cst_31 : f32 to vector<16x16xf32>
    %147 = arith.subf %146, %145 : vector<16x16xf32>
    %148 = arith.addf %129, %147 : vector<16x16xf32>
    %cst_32 = arith.constant 5.000000e-01 : f32
    %149 = vector.broadcast %cst_32 : f32 to vector<16x16xf32>
    %150 = arith.mulf %148, %149 : vector<16x16xf32>
    %cst_33 = arith.constant dense<0.000000e+00> : vector<16xf32>
    %151 = vector.multi_reduction <add>, %150, %cst_33 [0] : vector<16x16xf32> to vector<16xf32>
    %152 = vector.shape_cast %151 : vector<16xf32> to vector<1x16xf32>
    %153 = vector.shape_cast %152 : vector<1x16xf32> to vector<1x1x16xf32>
    %cst_34 = arith.constant dense<0.000000e+00> : vector<1xf32>
    %154 = vector.multi_reduction <add>, %153, %cst_34 [1, 2] : vector<1x1x16xf32> to vector<1xf32>
    %155 = vector.shape_cast %154 : vector<1xf32> to vector<1x1x1xf32>
    %156 = vector.extract %155[0, 0, 0] : f32 from vector<1x1x1xf32>
    %157 = vector.broadcast %156 : f32 to vector<1x8x128xf32>
    %c0_35 = arith.constant 0 : index
    %c0_36 = arith.constant 0 : index
    %c0_37 = arith.constant 0 : index
    %158 = vector.load %arg6[%c0_35, %c0_36, %c0_37] : memref<1x8x128xf32, #tpu.memory_space<vmem>>, vector<1x8x128xf32>
    tpu.vector_store %arg6[%c0_35, %c0_36, %c0_37], %157 {strides = array<i32>} : memref<1x8x128xf32, #tpu.memory_space<vmem>>, vector<1x8x128xf32>,
    return
  }
  func.func @transform_0(%arg0: i32) -> (i32, i32, i32) {
    %c0_i32 = arith.constant 0 : i32
    %c0_i32_0 = arith.constant 0 : i32
    %c0_i32_1 = arith.constant 0 : i32
    return %arg0, %c0_i32, %c0_i32_0 : i32, i32, i32
  }
  func.func @transform_1(%arg0: i32) -> (i32, i32, i32) {
    %c0_i32 = arith.constant 0 : i32
    %c0_i32_0 = arith.constant 0 : i32
    %c0_i32_1 = arith.constant 0 : i32
    return %arg0, %c0_i32, %c0_i32_0 : i32, i32, i32
  }
  func.func @transform_2(%arg0: i32) -> (i32, i32, i32) {
    %c0_i32 = arith.constant 0 : i32
    %c0_i32_0 = arith.constant 0 : i32
    %c0_i32_1 = arith.constant 0 : i32
    return %arg0, %c0_i32, %c0_i32_0 : i32, i32, i32
  }
  func.func @transform_3(%arg0: i32) -> (i32, i32) {
    %c0_i32 = arith.constant 0 : i32
    %c0_i32_0 = arith.constant 0 : i32
    %c0_i32_1 = arith.constant 0 : i32
    return %c0_i32, %c0_i32_0 : i32, i32
  }
  func.func @transform_4(%arg0: i32) -> (i32, i32) {
    %c0_i32 = arith.constant 0 : i32
    %c0_i32_0 = arith.constant 0 : i32
    %c0_i32_1 = arith.constant 0 : i32
    return %c0_i32, %c0_i32_0 : i32, i32
  }
  func.func @transform_5(%arg0: i32) -> (i32, i32, i32) {
    %c0_i32 = arith.constant 0 : i32
    %c0_i32_0 = arith.constant 0 : i32
    %c0_i32_1 = arith.constant 0 : i32
    return %arg0, %c0_i32, %c0_i32_0 : i32, i32, i32
  }
}

</mosaic_0001>

<llo_original>
// kernel: tpu_custom_call.1
$region0: #{tpu_custom_call.1}
  #allocation0 [shape = 'u32[]', space=smem, size = 0x4, offset = 0x4, fixed_abs, tag = 'smem constant byte address 0x4 - core index']
  #allocation1 [shape = 'u32[144,128]{1,0:T(1,128)}', space=vmem, size = 0x12000, scoped, tag = 'internal scratch']
  %s0 = inlined_call_operand.hbm [shape: f32[2,16,16], index: 0, kind: input, shape index: {}]
  %s1 = inlined_call_operand.hbm [shape: f32[2,16,16], index: 1, kind: input, shape index: {}]
  %s2 = inlined_call_operand.hbm [shape: f32[2,16,16], index: 2, kind: input, shape index: {}]
  %s3 = inlined_call_operand.hbm [shape: bf16[16,16], index: 3, kind: input, shape index: {}]
  %s4 = inlined_call_operand.hbm [shape: bf16[16,32], index: 4, kind: input, shape index: {}]
  %s5 = inlined_call_operand.hbm [shape: f32[2,8,128], index: 5, kind: output, shape index: {}]
  %s6 = sld [smem:[#allocation0]]
  $region73: #{tpu_custom_call.1} parent=0
    _
  %s8 = ssub.s32 1, %s6
  %s9 = scalar_select 0, %s8, %s6
  $region1: #{tpu_custom_call.1} parent=0
    #allocation2 [shape = 'u8[16384]{0}', space=vmem, size = 0x4000, scoped, tag = 'input window, operand 0']
    #allocation3 [shape = 's32[2]{0}', space=sflag, size = 0x8, scoped, tag = 'scoped memory for tpu_custom_call.1']
    #allocation4 [shape = 's32[2]{0}', space=sflag, size = 0x8, scoped, tag = 'scoped memory for tpu_custom_call.1']
    #allocation5 [shape = 'u8[16384]{0}', space=vmem, size = 0x4000, scoped, tag = 'input window, operand 1']
    #allocation6 [shape = 's32[2]{0}', space=sflag, size = 0x8, scoped, tag = 'scoped memory for tpu_custom_call.1']
    #allocation7 [shape = 'u8[16384]{0}', space=vmem, size = 0x4000, scoped, tag = 'input window, operand 2']
    #allocation8 [shape = 'u8[4096]{0}', space=vmem, size = 0x1000, scoped, tag = 'input window, operand 3, single buffered']
    #allocation9 [shape = 's32[1]{0}', space=sflag, size = 0x4, scoped, tag = 'scoped memory for tpu_custom_call.1']
    #allocation10 [shape = 'u8[4096]{0}', space=vmem, size = 0x1000, scoped, tag = 'input window, operand 4, single buffered']
    #allocation11 [shape = 'u8[8192]{0}', space=vmem, size = 0x2000, scoped, tag = 'output window, operand 0']
    %10 = vsyncpa [#allocation3], 0
    %s11 = scalar_lea.sflag [#allocation3], 1
    %12 = vsyncpa %s11, 0
    %13 = vsyncpa [#allocation6], 0
    %s14 = scalar_lea.sflag [#allocation6], 1
    %15 = vsyncpa %s14, 0
    %16 = vsyncpa [#allocation9], 0
    %17 = vsyncpa [#allocation4], 0
    %s18 = scalar_lea.sflag [#allocation4], 1
    %19 = vsyncpa %s18, 0
    loop: start=0, step=1, limit=4
    $region2: #{tpu_custom_call.1} parent=1 // loop_pre_header
      _
    $region3: #{tpu_custom_call.1} parent=1 // loop_header
      %s21 = sphi 0, %s25
      %p22 = scmp.ge.s32.totalorder %s21, 4
      %s31 = sphi 0, %s33
      %s34 = sphi 0, %s31
      %s35 = sphi 0, %s34
      %s51 = sphi 0, %s35
      %s57 = sphi 0, %s59
      %s60 = sphi 0, %s57
      %s61 = sphi 0, %s60
      %s77 = sphi 0, %s61
      %s83 = sphi 0, %s85
      %s86 = sphi 0, %s83
      %s87 = sphi 0, %s86
      %s103 = sphi 0, %s87
      %s107 = sphi 0, %s107
      %s109 = sphi 0, %s107
      %s110 = sphi 0, %s109
      %s124 = sphi 0, %s110
      %s128 = sphi 0, %s128
      %s130 = sphi 0, %s128
      %s131 = sphi 0, %s130
      %s145 = sphi 0, %s131
      %s151 = sphi 0, %s153
      %s154 = sphi 0, %s151
      %s155 = sphi 0, %s154
      %s171 = sphi 0, %s155
    $region4: #{tpu_custom_call.1} parent=1 // loop_header_branch
      %24 = sbr.rel (%p22) target = $region8
    $region5: #{tpu_custom_call.1} parent=1 // loop_body
      %s26 = ssub.s32 %s21, 1
      %s27 = ssub.s32 %s21, 2
      %s28 = sadd.s32 %s21, 1
      %s29 = ssub.s32 %s21, %s28
      %p30 = scmp.eq.s32.totalorder %s29, 0
      %s32 = sadd.s32 %s31, 1
      %s33 = scalar_select %p30, %s31, %s32
      %p36 = pneg %p30
      %p37 = scmp.eq.s32.totalorder %s21, 1
      %p38 = por %p36, %p37
      %p39 = scmp.ne.s32.totalorder %s31, %s34
      %p40 = scmp.eq.s32.totalorder %s21, 0
      %p41 = por %p39, %p40
      %p42 = scmp.ne.s32.totalorder %s31, %s34
      %p43 = scmp.eq.s32.totalorder %s26, 1
      %p44 = por %p42, %p43
      %p45 = scmp.ne.s32.totalorder %s34, %s35
      %p46 = scmp.eq.s32.totalorder %s26, 0
      %p47 = por %p45, %p46
      %p48 = scmp.ne.s32.totalorder %s34, %s35
      %p49 = scmp.eq.s32.totalorder %s27, 1
      %p50 = por %p48, %p49
      %p52 = scmp.ne.s32.totalorder %s35, %s51
      %p53 = scmp.eq.s32.totalorder %s27, 0
      %p54 = por %p52, %p53
      %s55 = ssub.s32 %s21, %s28
      %p56 = scmp.eq.s32.totalorder %s55, 0
      %s58 = sadd.s32 %s57, 1
      %s59 = scalar_select %p56, %s57, %s58
      %p62 = pneg %p56
      %p63 = scmp.eq.s32.totalorder %s21, 1
      %p64 = por %p62, %p63
      %p65 = scmp.ne.s32.totalorder %s57, %s60
      %p66 = scmp.eq.s32.totalorder %s21, 0
      %p67 = por %p65, %p66
      %p68 = scmp.ne.s32.totalorder %s57, %s60
      %p69 = scmp.eq.s32.totalorder %s26, 1
      %p70 = por %p68, %p69
      %p71 = scmp.ne.s32.totalorder %s60, %s61
      %p72 = scmp.eq.s32.totalorder %s26, 0
      %p73 = por %p71, %p72
      %p74 = scmp.ne.s32.totalorder %s60, %s61
      %p75 = scmp.eq.s32.totalorder %s27, 1
      %p76 = por %p74, %p75
      %p78 = scmp.ne.s32.totalorder %s61, %s77
      %p79 = scmp.eq.s32.totalorder %s27, 0
      %p80 = por %p78, %p79
      %s81 = ssub.s32 %s21, %s28
      %p82 = scmp.eq.s32.totalorder %s81, 0
      %s84 = sadd.s32 %s83, 1
      %s85 = scalar_select %p82, %s83, %s84
      %p88 = pneg %p82
      %p89 = scmp.eq.s32.totalorder %s21, 1
      %p90 = por %p88, %p89
      %p91 = scmp.ne.s32.totalorder %s83, %s86
      %p92 = scmp.eq.s32.totalorder %s21, 0
      %p93 = por %p91, %p92
      %p94 = scmp.ne.s32.totalorder %s83, %s86
      %p95 = scmp.eq.s32.totalorder %s26, 1
      %p96 = por %p94, %p95
      %p97 = scmp.ne.s32.totalorder %s86, %s87
      %p98 = scmp.eq.s32.totalorder %s26, 0
      %p99 = por %p97, %p98
      %p100 = scmp.ne.s32.totalorder %s86, %s87
      %p101 = scmp.eq.s32.totalorder %s27, 1
      %p102 = por %p100, %p101
      %p104 = scmp.ne.s32.totalorder %s87, %s103
      %p105 = scmp.eq.s32.totalorder %s27, 0
      %p106 = por %p104, %p105
      %s108 = sadd.s32 %s107, 1
      %p111 = scmp.eq.s32.totalorder %s21, 1
      %p112 = scmp.ne.s32.totalorder %s107, %s109
      %p113 = scmp.eq.s32.totalorder %s21, 0
      %p114 = por %p112, %p113
      %p115 = scmp.ne.s32.totalorder %s107, %s109
      %p116 = scmp.eq.s32.totalorder %s26, 1
      %p117 = por %p115, %p116
      %p118 = scmp.ne.s32.totalorder %s109, %s110
      %p119 = scmp.eq.s32.totalorder %s26, 0
      %p120 = por %p118, %p119
      %p121 = scmp.ne.s32.totalorder %s109, %s110
      %p122 = scmp.eq.s32.totalorder %s27, 1
      %p123 = por %p121, %p122
      %p125 = scmp.ne.s32.totalorder %s110, %s124
      %p126 = scmp.eq.s32.totalorder %s27, 0
      %p127 = por %p125, %p126
      %s129 = sadd.s32 %s128, 1
      %p132 = scmp.eq.s32.totalorder %s21, 1
      %p133 = scmp.ne.s32.totalorder %s128, %s130
      %p134 = scmp.eq.s32.totalorder %s21, 0
      %p135 = por %p133, %p134
      %p136 = scmp.ne.s32.totalorder %s128, %s130
      %p137 = scmp.eq.s32.totalorder %s26, 1
      %p138 = por %p136, %p137
      %p139 = scmp.ne.s32.totalorder %s130, %s131
      %p140 = scmp.eq.s32.totalorder %s26, 0
      %p141 = por %p139, %p140
      %p142 = scmp.ne.s32.totalorder %s130, %s131
      %p143 = scmp.eq.s32.totalorder %s27, 1
      %p144 = por %p142, %p143
      %p146 = scmp.ne.s32.totalorder %s131, %s145
      %p147 = scmp.eq.s32.totalorder %s27, 0
      %p148 = por %p146, %p147
      %s149 = ssub.s32 %s21, %s28
      %p150 = scmp.eq.s32.totalorder %s149, 0
      %s152 = sadd.s32 %s151, 1
      %s153 = scalar_select %p150, %s151, %s152
      %p156 = pneg %p150
      %p157 = scmp.eq.s32.totalorder %s21, 1
      %p158 = por %p156, %p157
      %p159 = scmp.ne.s32.totalorder %s151, %s154
      %p160 = scmp.eq.s32.totalorder %s21, 0
      %p161 = por %p159, %p160
      %p162 = scmp.ne.s32.totalorder %s151, %s154
      %p163 = scmp.eq.s32.totalorder %s26, 1
      %p164 = por %p162, %p163
      %p165 = scmp.ne.s32.totalorder %s154, %s155
      %p166 = scmp.eq.s32.totalorder %s26, 0
      %p167 = por %p165, %p166
      %p168 = scmp.ne.s32.totalorder %s154, %s155
      %p169 = scmp.eq.s32.totalorder %s27, 1
      %p170 = por %p168, %p169
      %p172 = scmp.ne.s32.totalorder %s155, %s171
      %p173 = scmp.eq.s32.totalorder %s27, 0
      %p174 = por %p172, %p173
      %p175 = scmp.le.s32.totalorder 1, %s21
      %p176 = scmp.lt.s32.totalorder %s21, 3
      %p177 = pnand %p175, %p176
      %p178 = pneg %p177
      // Predicated region
      $region9: #{tpu_custom_call.1} parent=5 // pred_check
        _
      $region10: #{tpu_custom_call.1} parent=5 // pred_check_branch
        %180 = sbr.rel (%p177) target = $region12
      $region11: #{tpu_custom_call.1} parent=5 // pred_region
        %s181 = ssub.s32 %s21, 1
        // Predicated region
        $region13: #{tpu_custom_call.1} parent=11 // pred_check
          %p182 = pneg %p120
        $region14: #{tpu_custom_call.1} parent=11 // pred_check_branch
          %184 = sbr.rel (%p182) target = $region16
        $region15: #{tpu_custom_call.1} parent=11 // pred_region
          %s186 = ssub.s32 128, 128
          %187 = vsyncadd [#allocation9], %s186
          %s188 = sshll.u32 [#allocation8], 4
          %s189 = int_to_ptr.vmem [resolvable:$true] %s188
          %194 = dma.hbm_to_vmem [thread:$0]  %s3, 128, %s189, [#allocation9], 64, 64, 4
        $region16: #{tpu_custom_call.1} parent=11 // pred_fallthru
          _
        // Predicated region
        $region17: #{tpu_custom_call.1} parent=11 // pred_check
          %p195 = pneg %p141
        $region18: #{tpu_custom_call.1} parent=11 // pred_check_branch
          %197 = sbr.rel (%p195) target = $region20
        $region19: #{tpu_custom_call.1} parent=11 // pred_region
          %s199 = ssub.s32 128, 128
          %200 = vsyncadd [#allocation9], %s199
          %s201 = sshll.u32 [#allocation10], 4
          %s202 = int_to_ptr.vmem [resolvable:$true] %s201
          %207 = dma.hbm_to_vmem [thread:$0]  %s4, 128, %s202, [#allocation9], 64, 64, 4
        $region20: #{tpu_custom_call.1} parent=11 // pred_fallthru
          _
      $region12: #{tpu_custom_call.1} parent=5 // pred_fallthru
        _
      %p208 = scmp.lt.s32.totalorder %s21, 2
      // Predicated region
      $region21: #{tpu_custom_call.1} parent=5 // pred_check
        %p209 = pneg %p208
      $region22: #{tpu_custom_call.1} parent=5 // pred_check_branch
        %211 = sbr.rel (%p209) target = $region24
      $region23: #{tpu_custom_call.1} parent=5 // pred_region
        // Predicated region
        $region25: #{tpu_custom_call.1} parent=23 // pred_check
          %p212 = pneg %p41
        $region26: #{tpu_custom_call.1} parent=23 // pred_check_branch
          %214 = sbr.rel (%p212) target = $region28
        $region27: #{tpu_custom_call.1} parent=23 // pred_region
          %s215 = sand.u32 %s31, 1
          %s216 = scalar_lea.sflag [#allocation3], %s215
          %s217 = sand.u32 %s31, 1
          %s218 = smul.addr %s217, 16
          %s219 = scalar_lea.vmem [#allocation2], %s218
          %s221 = ssub.s32 256, 256
          %222 = vsyncadd %s216, %s221
          %s223 = smul.addr %s21, 2
          %s224 = smul.addr %s223, 128
          %s225 = scalar_lea.hbm %s0, %s224
          %s226 = sshll.u32 %s219, 4
          %s227 = int_to_ptr.vmem [resolvable:$true] %s226
          %232 = dma.hbm_to_vmem [thread:$0]  %s225, 256, %s227, %s216, 128, 128, 8
        $region28: #{tpu_custom_call.1} parent=23 // pred_fallthru
          _
        // Predicated region
        $region29: #{tpu_custom_call.1} parent=23 // pred_check
          %p233 = pneg %p67
        $region30: #{tpu_custom_call.1} parent=23 // pred_check_branch
          %235 = sbr.rel (%p233) target = $region32
        $region31: #{tpu_custom_call.1} parent=23 // pred_region
          %s236 = sand.u32 %s21, 1
          %s237 = scalar_lea.sflag [#allocation6], %s236
          %s238 = sand.u32 %s57, 1
          %s239 = smul.addr %s238, 16
          %s240 = scalar_lea.vmem [#allocation5], %s239
          %s242 = ssub.s32 256, 256
          %243 = vsyncadd %s237, %s242
          %s244 = smul.addr %s21, 2
          %s245 = smul.addr %s244, 128
          %s246 = scalar_lea.hbm %s1, %s245
          %s247 = sshll.u32 %s240, 4
          %s248 = int_to_ptr.vmem [resolvable:$true] %s247
          %253 = dma.hbm_to_vmem [thread:$0]  %s246, 256, %s248, %s237, 128, 128, 8
        $region32: #{tpu_custom_call.1} parent=23 // pred_fallthru
          _
        // Predicated region
        $region33: #{tpu_custom_call.1} parent=23 // pred_check
          %p254 = pneg %p93
        $region34: #{tpu_custom_call.1} parent=23 // pred_check_branch
          %256 = sbr.rel (%p254) target = $region36
        $region35: #{tpu_custom_call.1} parent=23 // pred_region
          %s257 = sand.u32 %s21, 1
          %s258 = scalar_lea.sflag [#allocation6], %s257
          %s259 = sand.u32 %s83, 1
          %s260 = smul.addr %s259, 16
          %s261 = scalar_lea.vmem [#allocation7], %s260
          %s263 = ssub.s32 256, 256
          %264 = vsyncadd %s258, %s263
          %s265 = smul.addr %s21, 2
          %s266 = smul.addr %s265, 128
          %s267 = scalar_lea.hbm %s2, %s266
          %s268 = sshll.u32 %s261, 4
          %s269 = int_to_ptr.vmem [resolvable:$true] %s268
          %274 = dma.hbm_to_vmem [thread:$0]  %s267, 256, %s269, %s258, 128, 128, 8
        $region36: #{tpu_custom_call.1} parent=23 // pred_fallthru
          _
      $region24: #{tpu_custom_call.1} parent=5 // pred_fallthru
        _
      %p275 = scmp.le.s32.totalorder 1, %s21
      %p276 = scmp.lt.s32.totalorder %s21, 3
      %p277 = pnand %p275, %p276
      %p278 = pneg %p277
      // Predicated region
      $region37: #{tpu_custom_call.1} parent=5 // pred_check
        _
      $region38: #{tpu_custom_call.1} parent=5 // pred_check_branch
        %280 = sbr.rel (%p277) target = $region40
      $region39: #{tpu_custom_call.1} parent=5 // pred_region
        %s281 = ssub.s32 %s21, 1
        %s282 = sand.u32 %s34, 1
        %s283 = scalar_lea.sflag [#allocation3], %s282
        %s284 = sand.u32 %s34, 1
        %s285 = smul.addr %s284, 16
        %s286 = scalar_lea.vmem [#allocation2], %s285
        // Predicated region
        $region41: #{tpu_custom_call.1} parent=39 // pred_check
          %p287 = pneg %p47
        $region42: #{tpu_custom_call.1} parent=39 // pred_check_branch
          %289 = sbr.rel (%p287) target = $region44
        $region43: #{tpu_custom_call.1} parent=39 // pred_region
          %290 = dma.done %s283, 256
        $region44: #{tpu_custom_call.1} parent=39 // pred_fallthru
          _
        %s291 = sand.u32 %s26, 1
        %s292 = scalar_lea.sflag [#allocation6], %s291
        %s293 = sand.u32 %s60, 1
        %s294 = smul.addr %s293, 16
        %s295 = scalar_lea.vmem [#allocation5], %s294
        // Predicated region
        $region45: #{tpu_custom_call.1} parent=39 // pred_check
          %p296 = pneg %p73
        $region46: #{tpu_custom_call.1} parent=39 // pred_check_branch
          %298 = sbr.rel (%p296) target = $region48
        $region47: #{tpu_custom_call.1} parent=39 // pred_region
          %299 = dma.done %s292, 256
        $region48: #{tpu_custom_call.1} parent=39 // pred_fallthru
          _
        %s300 = sand.u32 %s26, 1
        %s301 = scalar_lea.sflag [#allocation6], %s300
        %s302 = sand.u32 %s86, 1
        %s303 = smul.addr %s302, 16
        %s304 = scalar_lea.vmem [#allocation7], %s303
        // Predicated region
        $region49: #{tpu_custom_call.1} parent=39 // pred_check
          %p305 = pneg %p99
        $region50: #{tpu_custom_call.1} parent=39 // pred_check_branch
          %307 = sbr.rel (%p305) target = $region52
        $region51: #{tpu_custom_call.1} parent=39 // pred_region
          %308 = dma.done %s301, 256
        $region52: #{tpu_custom_call.1} parent=39 // pred_fallthru
          _
        // Predicated region
        $region53: #{tpu_custom_call.1} parent=39 // pred_check
          %p309 = pneg %p120
        $region54: #{tpu_custom_call.1} parent=39 // pred_check_branch
          %311 = sbr.rel (%p309) target = $region56
        $region55: #{tpu_custom_call.1} parent=39 // pred_region
          %312 = dma.done [#allocation9], 128
        $region56: #{tpu_custom_call.1} parent=39 // pred_fallthru
          _
        // Predicated region
        $region57: #{tpu_custom_call.1} parent=39 // pred_check
          %p313 = pneg %p141
        $region58: #{tpu_custom_call.1} parent=39 // pred_check_branch
          %315 = sbr.rel (%p313) target = $region60
        $region59: #{tpu_custom_call.1} parent=39 // pred_region
          %316 = dma.done [#allocation9], 128
        $region60: #{tpu_custom_call.1} parent=39 // pred_fallthru
          _
        %s317 = sand.u32 %s34, 1
        %s318 = scalar_lea.sflag [#allocation3], %s317
        %s319 = sand.u32 %s34, 1
        %s320 = smul.addr %s319, 16
        %s321 = scalar_lea.vmem [#allocation2], %s320
        %p322 = pneg %p47
        %p323 = pneg %p44
        %s324 = sand.u32 %s26, 1
        %s325 = scalar_lea.sflag [#allocation6], %s324
        %s326 = sand.u32 %s60, 1
        %s327 = smul.addr %s326, 16
        %s328 = scalar_lea.vmem [#allocation5], %s327
        %p329 = pneg %p73
        %p330 = pneg %p70
        %s331 = sand.u32 %s26, 1
        %s332 = scalar_lea.sflag [#allocation6], %s331
        %s333 = sand.u32 %s86, 1
        %s334 = smul.addr %s333, 16
        %s335 = scalar_lea.vmem [#allocation7], %s334
        %p336 = pneg %p99
        %p337 = pneg %p96
        %p338 = pneg %p120
        %p339 = pneg %p117
        %p340 = pneg %p141
        %p341 = pneg %p138
        %p342 = pneg %p167
        %p343 = pneg %p164
        %s344 = sand.u32 %s154, 1
        %s345 = scalar_lea.sflag [#allocation4], %s344
        %s346 = sand.u32 %s154, 1
        %s347 = smul.addr %s346, 8
        %s348 = scalar_lea.vmem [#allocation11], %s347
        %v350 = vld [vmem:[#allocation8] sm:$0xf]
        %v351 = vld [vmem:[#allocation8 + $0x4] sm:$0xf]
        %v352 = vld [vmem:[#allocation10] sm:$0xf]
        %v353 = vld [vmem:[#allocation10 + $0x4] sm:$0xf]
        %v354 = vld [vmem:[%s286] sm:$0xff]
        %v355 = vld [vmem:[%s286 + $0x8] sm:$0xff]
        %v356 = vld [vmem:[%s295] sm:$0xff]
        %v357 = vld [vmem:[%s295 + $0x8] sm:$0xff]
        %v358 = vld [vmem:[%s304] sm:$0xff]
        %v359 = vld [vmem:[%s304 + $0x8] sm:$0xff]
        %v360 = vmul.f32 %v358, %v358
        %v361 = vmul.f32 %v359, %v359
        %v362 = vmul.f32 %v354, %v354
        %v363 = vmul.f32 %v355, %v355
        %v364 = vmul.f32 %v354, %v358
        %v365 = vmul.f32 %v355, %v359
        %v366 = vmul.f32 %v356, %v356
        %v367 = vmul.f32 %v357, %v357
        %v368 = vmul.f32 %v356, %v358
        %v369 = vmul.f32 %v357, %v359
        %v370 = vpack.c.bf16 %v359, %v358
        %v371 = vunpack.c.l.bf16 %v370
        %v372 = vunpack.c.h.bf16 %v370
        %v373 = vsub.f32 %v358, %v371
        %v374 = vsub.f32 %v359, %v372
        %v375 = vpack.c.bf16 %v374, %v373
        %v376 = vpack.c.bf16 %v361, %v360
        %v377 = vunpack.c.l.bf16 %v376
        %v378 = vunpack.c.h.bf16 %v376
        %v379 = vsub.f32 %v360, %v377
        %v380 = vsub.f32 %v361, %v378
        %v381 = vpack.c.bf16 %v380, %v379
        %v382 = vpack.c.bf16 %v355, %v354
        %v383 = vunpack.c.l.bf16 %v382
        %v384 = vunpack.c.h.bf16 %v382
        %v385 = vsub.f32 %v354, %v383
        %v386 = vsub.f32 %v355, %v384
        %v387 = vpack.c.bf16 %v386, %v385
        %v388 = vpack.c.bf16 %v363, %v362
        %v389 = vunpack.c.l.bf16 %v388
        %v390 = vunpack.c.h.bf16 %v388
        %v391 = vsub.f32 %v362, %v389
        %v392 = vsub.f32 %v363, %v390
        %v393 = vpack.c.bf16 %v392, %v391
        %v394 = vpack.c.bf16 %v365, %v364
        %v395 = vunpack.c.l.bf16 %v394
        %v396 = vunpack.c.h.bf16 %v394
        %v397 = vsub.f32 %v364, %v395
        %v398 = vsub.f32 %v365, %v396
        %v399 = vpack.c.bf16 %v398, %v397
        %v400 = vpack.c.bf16 %v357, %v356
        %v401 = vunpack.c.l.bf16 %v400
        %v402 = vunpack.c.h.bf16 %v400
        %v403 = vsub.f32 %v356, %v401
        %v404 = vsub.f32 %v357, %v402
        %v405 = vpack.c.bf16 %v404, %v403
        %v406 = vpack.c.bf16 %v367, %v366
        %v407 = vunpack.c.l.bf16 %v406
        %v408 = vunpack.c.h.bf16 %v406
        %v409 = vsub.f32 %v366, %v407
        %v410 = vsub.f32 %v367, %v408
        %v411 = vpack.c.bf16 %v410, %v409
        %v412 = vpack.c.bf16 %v369, %v368
        %v413 = vunpack.c.l.bf16 %v412
        %v414 = vunpack.c.h.bf16 %v412
        %v415 = vsub.f32 %v368, %v413
        %v416 = vsub.f32 %v369, %v414
        %v417 = vpack.c.bf16 %v416, %v415
        %v420 = vunpack.c.l.b16 %v350
        %v421 = vunpack.c.l.b16 %v351
        %v422 = vpack.c.b16 %v421, %v420
        %vm424 = vcmask 130048
        %v426 = vsel %vm424, %v370, 0
        %v429 = vsel %vm424, %v376, 0
        %v432 = vsel %vm424, %v382, 0
        %v435 = vsel %vm424, %v388, 0
        %v438 = vsel %vm424, %v394, 0
        %v441 = vsel %vm424, %v400, 0
        %v444 = vsel %vm424, %v406, 0
        %v447 = vsel %vm424, %v412, 0
        %v450 = vsel %vm424, %v375, 0
        %v453 = vsel %vm424, %v381, 0
        %v456 = vsel %vm424, %v387, 0
        %v459 = vsel %vm424, %v393, 0
        %v462 = vsel %vm424, %v399, 0
        %v465 = vsel %vm424, %v405, 0
        %v468 = vsel %vm424, %v411, 0
        %v471 = vsel %vm424, %v417, 0
        %473 = vmatprep.subr.bf16.mxu0 0
        %474 = vmatpush1.bf16.msra.mxu0 %v422
        %475 = vmatprep.subr.bf16.mxu0 0
        %476 = vmatpush1.bf16.msra.mxu0 0
        %477 = vmatprep.subr.bf16.mxu0 0
        %478 = vmatpush1.bf16.msra.mxu0 0
        %479 = vmatprep.subr.bf16.mxu0 0
        %480 = vmatpush1.bf16.msra.mxu0 0
        %481 = vmatprep.subr.bf16.mxu0 0
        %482 = vmatpush1.bf16.msra.mxu0 0
        %483 = vmatprep.subr.bf16.mxu0 0
        %484 = vmatpush1.bf16.msra.mxu0 0
        %485 = vmatprep.subr.bf16.mxu0 0
        %486 = vmatpush1.bf16.msra.mxu0 0
        %487 = vmatprep.subr.bf16.mxu0 0
        %488 = vmatpush1.bf16.msra.mxu0 0
        %489 = vmatprep.subr.bf16.mxu0 0
        %490 = vmatpush1.bf16.msra.mxu0 0
        %491 = vmatprep.subr.bf16.mxu0 0
        %492 = vmatpush1.bf16.msra.mxu0 0
        %493 = vmatprep.subr.bf16.mxu0 0
        %494 = vmatpush1.bf16.msra.mxu0 0
        %495 = vmatprep.subr.bf16.mxu0 0
        %496 = vmatpush1.bf16.msra.mxu0 0
        %497 = vmatprep.subr.bf16.mxu0 0
        %498 = vmatpush1.bf16.msra.mxu0 0
        %499 = vmatprep.subr.bf16.mxu0 0
        %500 = vmatpush1.bf16.msra.mxu0 0
        %501 = vmatprep.subr.bf16.mxu0 0
        %502 = vmatpush1.bf16.msra.mxu0 0
        %503 = vmatprep.subr.bf16.mxu0 0
        %504 = vmatpush1.bf16.msra.mxu0 0
        %505 = vmatprep.mubr.bf16.mxu0 0
        %506 = vmatmul.mubr.bf16.gmra.mrb[0].mxu0 %v426
        %v507 = vpop.f32.mrb[0].mxu0
        %v508 = vadd.f32 0.0, %v507
        %v509 = vpop.f32.mrb[0].mxu0
        %v510 = vpop.f32.mrb[0].mxu0
        %v511 = vadd.f32 0.0, %v510
        %v512 = vpop.f32.mrb[0].mxu0
        %513 = vmatprep.mubr.bf16.mxu0 0
        %514 = vmatmul.mubr.bf16.gmra.mrb[0].mxu0 %v429
        %v515 = vpop.f32.mrb[0].mxu0
        %v516 = vadd.f32 0.0, %v515
        %v517 = vpop.f32.mrb[0].mxu0
        %v518 = vpop.f32.mrb[0].mxu0
        %v519 = vadd.f32 0.0, %v518
        %v520 = vpop.f32.mrb[0].mxu0
        %521 = vmatprep.mubr.bf16.mxu0 0
        %522 = vmatmul.mubr.bf16.gmra.mrb[0].mxu0 %v432
        %v523 = vpop.f32.mrb[0].mxu0
        %v524 = vadd.f32 0.0, %v523
        %v525 = vpop.f32.mrb[0].mxu0
        %v526 = vpop.f32.mrb[0].mxu0
        %v527 = vadd.f32 0.0, %v526
        %v528 = vpop.f32.mrb[0].mxu0
        %529 = vmatprep.mubr.bf16.mxu0 0
        %530 = vmatmul.mubr.bf16.gmra.mrb[0].mxu0 %v435
        %v531 = vpop.f32.mrb[0].mxu0
        %v532 = vadd.f32 0.0, %v531
        %v533 = vpop.f32.mrb[0].mxu0
        %v534 = vpop.f32.mrb[0].mxu0
        %v535 = vadd.f32 0.0, %v534
        %v536 = vpop.f32.mrb[0].mxu0
        %537 = vmatprep.mubr.bf16.mxu0 0
        %538 = vmatmul.mubr.bf16.gmra.mrb[0].mxu0 %v438
        %v539 = vpop.f32.mrb[0].mxu0
        %v540 = vadd.f32 0.0, %v539
        %v541 = vpop.f32.mrb[0].mxu0
        %v542 = vpop.f32.mrb[0].mxu0
        %v543 = vadd.f32 0.0, %v542
        %v544 = vpop.f32.mrb[0].mxu0
        %545 = vmatprep.mubr.bf16.mxu0 0
        %546 = vmatmul.mubr.bf16.gmra.mrb[0].mxu0 %v441
        %v547 = vpop.f32.mrb[0].mxu0
        %v548 = vadd.f32 0.0, %v547
        %v549 = vpop.f32.mrb[0].mxu0
        %v550 = vpop.f32.mrb[0].mxu0
        %v551 = vadd.f32 0.0, %v550
        %v552 = vpop.f32.mrb[0].mxu0
        %553 = vmatprep.mubr.bf16.mxu0 0
        %554 = vmatmul.mubr.bf16.gmra.mrb[0].mxu0 %v444
        %v555 = vpop.f32.mrb[0].mxu0
        %v556 = vadd.f32 0.0, %v555
        %v557 = vpop.f32.mrb[0].mxu0
        %v558 = vpop.f32.mrb[0].mxu0
        %v559 = vadd.f32 0.0, %v558
        %v560 = vpop.f32.mrb[0].mxu0
        %561 = vmatprep.mubr.bf16.mxu0 0
        %562 = vmatmul.mubr.bf16.gmra.mrb[0].mxu0 %v447
        %v563 = vpop.f32.mrb[0].mxu0
        %v564 = vadd.f32 0.0, %v563
        %v565 = vpop.f32.mrb[0].mxu0
        %v566 = vpop.f32.mrb[0].mxu0
        %v567 = vadd.f32 0.0, %v566
        %v568 = vpop.f32.mrb[0].mxu0
        %569 = vmatprep.mubr.bf16.mxu0 0
        %570 = vmatmul.mubr.bf16.gmra.mrb[0].mxu0 %v450
        %v571 = vpop.f32.mrb[0].mxu0
        %v572 = vadd.f32 0.0, %v571
        %v573 = vpop.f32.mrb[0].mxu0
        %v574 = vpop.f32.mrb[0].mxu0
        %v575 = vadd.f32 0.0, %v574
        %v576 = vpop.f32.mrb[0].mxu0
        %577 = vmatprep.mubr.bf16.mxu0 0
        %578 = vmatmul.mubr.bf16.gmra.mrb[0].mxu0 %v453
        %v579 = vpop.f32.mrb[0].mxu0
        %v580 = vadd.f32 0.0, %v579
        %v581 = vpop.f32.mrb[0].mxu0
        %v582 = vpop.f32.mrb[0].mxu0
        %v583 = vadd.f32 0.0, %v582
        %v584 = vpop.f32.mrb[0].mxu0
        %585 = vmatprep.mubr.bf16.mxu0 0
        %586 = vmatmul.mubr.bf16.gmra.mrb[0].mxu0 %v456
        %v587 = vpop.f32.mrb[0].mxu0
        %v588 = vadd.f32 0.0, %v587
        %v589 = vpop.f32.mrb[0].mxu0
        %v590 = vpop.f32.mrb[0].mxu0
        %v591 = vadd.f32 0.0, %v590
        %v592 = vpop.f32.mrb[0].mxu0
        %593 = vmatprep.mubr.bf16.mxu0 0
        %594 = vmatmul.mubr.bf16.gmra.mrb[0].mxu0 %v459
        %v595 = vpop.f32.mrb[0].mxu0
        %v596 = vadd.f32 0.0, %v595
        %v597 = vpop.f32.mrb[0].mxu0
        %v598 = vpop.f32.mrb[0].mxu0
        %v599 = vadd.f32 0.0, %v598
        %v600 = vpop.f32.mrb[0].mxu0
        %601 = vmatprep.mubr.bf16.mxu0 0
        %602 = vmatmul.mubr.bf16.gmra.mrb[0].mxu0 %v462
        %v603 = vpop.f32.mrb[0].mxu0
        %v604 = vadd.f32 0.0, %v603
        %v605 = vpop.f32.mrb[0].mxu0
        %v606 = vpop.f32.mrb[0].mxu0
        %v607 = vadd.f32 0.0, %v606
        %v608 = vpop.f32.mrb[0].mxu0
        %609 = vmatprep.mubr.bf16.mxu0 0
        %610 = vmatmul.mubr.bf16.gmra.mrb[0].mxu0 %v465
        %v611 = vpop.f32.mrb[0].mxu0
        %v612 = vadd.f32 0.0, %v611
        %v613 = vpop.f32.mrb[0].mxu0
        %v614 = vpop.f32.mrb[0].mxu0
        %v615 = vadd.f32 0.0, %v614
        %v616 = vpop.f32.mrb[0].mxu0
        %617 = vmatprep.mubr.bf16.mxu0 0
        %618 = vmatmul.mubr.bf16.gmra.mrb[0].mxu0 %v468
        %v619 = vpop.f32.mrb[0].mxu0
        %v620 = vadd.f32 0.0, %v619
        %v621 = vpop.f32.mrb[0].mxu0
        %v622 = vpop.f32.mrb[0].mxu0
        %v623 = vadd.f32 0.0, %v622
        %v624 = vpop.f32.mrb[0].mxu0
        %625 = vmatprep.mubr.bf16.mxu0 0
        %626 = vmatmul.mubr.bf16.gmra.mrb[0].mxu0 %v471
        %v627 = vpop.f32.mrb[0].mxu0
        %v628 = vadd.f32 0.0, %v627
        %v629 = vpop.f32.mrb[0].mxu0
        %v630 = vpop.f32.mrb[0].mxu0
        %v631 = vadd.f32 0.0, %v630
        %v632 = vpop.f32.mrb[0].mxu0
        %633 = vdwg.mxu0
        %v634 = vadd.f32 %v508, %v572
        %v635 = vadd.f32 %v511, %v575
        %v636 = vadd.f32 %v516, %v580
        %v637 = vadd.f32 %v519, %v583
        %v638 = vadd.f32 %v524, %v588
        %v639 = vadd.f32 %v527, %v591
        %v640 = vadd.f32 %v532, %v596
        %v641 = vadd.f32 %v535, %v599
        %v642 = vadd.f32 %v540, %v604
        %v643 = vadd.f32 %v543, %v607
        %v644 = vadd.f32 %v548, %v612
        %v645 = vadd.f32 %v551, %v615
        %v646 = vadd.f32 %v556, %v620
        %v647 = vadd.f32 %v559, %v623
        %v648 = vadd.f32 %v564, %v628
        %v649 = vadd.f32 %v567, %v631
        %v650 = vpack.c.bf16 %v635, %v634
        %v651 = vunpack.c.l.bf16 %v650
        %v652 = vunpack.c.h.bf16 %v650
        %v653 = vsub.f32 %v634, %v651
        %v654 = vsub.f32 %v635, %v652
        %v655 = vpack.c.bf16 %v654, %v653
        %v658 = vunpack.c.l.b16 %v352
        %v659 = vunpack.c.l.b16 %v353
        %v660 = vpack.c.b16 %v659, %v658
        %vm661 = vcmask 261120
        %v663 = vsel %vm661, %v660, 0
        %665 = vmatprep.subr.bf16.mxu0 0
        %666 = vmatpush1.bf16.msra.mxu0 %v650
        %667 = vmatprep.subr.bf16.mxu0 0
        %668 = vmatpush1.bf16.msra.mxu0 %v655
        %669 = vmatprep.subr.bf16.mxu0 0
        %670 = vmatpush1.bf16.msra.mxu0 0
        %671 = vmatprep.subr.bf16.mxu0 0
        %672 = vmatpush1.bf16.msra.mxu0 0
        %673 = vmatprep.subr.bf16.mxu0 0
        %674 = vmatpush1.bf16.msra.mxu0 0
        %675 = vmatprep.subr.bf16.mxu0 0
        %676 = vmatpush1.bf16.msra.mxu0 0
        %677 = vmatprep.subr.bf16.mxu0 0
        %678 = vmatpush1.bf16.msra.mxu0 0
        %679 = vmatprep.subr.bf16.mxu0 0
        %680 = vmatpush1.bf16.msra.mxu0 0
        %681 = vmatprep.subr.bf16.mxu0 0
        %682 = vmatpush1.bf16.msra.mxu0 0
        %683 = vmatprep.subr.bf16.mxu0 0
        %684 = vmatpush1.bf16.msra.mxu0 0
        %685 = vmatprep.subr.bf16.mxu0 0
        %686 = vmatpush1.bf16.msra.mxu0 0
        %687 = vmatprep.subr.bf16.mxu0 0
        %688 = vmatpush1.bf16.msra.mxu0 0
        %689 = vmatprep.subr.bf16.mxu0 0
        %690 = vmatpush1.bf16.msra.mxu0 0
        %691 = vmatprep.subr.bf16.mxu0 0
        %692 = vmatpush1.bf16.msra.mxu0 0
        %693 = vmatprep.subr.bf16.mxu0 0
        %694 = vmatpush1.bf16.msra.mxu0 0
        %695 = vmatprep.subr.bf16.mxu0 0
        %696 = vmatpush1.bf16.msra.mxu0 0
        %697 = vmatprep.mubr.bf16.mxu0 0
        %698 = vmatmul.mubr.bf16.gmra.mrb[0].mxu0 %v663
        %v699 = vpop.f32.mrb[0].mxu0
        %v700 = vadd.f32 0.0, %v699
        %v701 = vpop.f32.mrb[0].mxu0
        %v702 = vpop.f32.mrb[0].mxu0
        %v703 = vadd.f32 0.0, %v702
        %v704 = vpop.f32.mrb[0].mxu0
        %705 = vdwg.mxu0
        %v706 = vpack.c.bf16 %v637, %v636
        %v707 = vunpack.c.l.bf16 %v706
        %v708 = vunpack.c.h.bf16 %v706
        %v709 = vsub.f32 %v636, %v707
        %v710 = vsub.f32 %v637, %v708
        %v711 = vpack.c.bf16 %v710, %v709
        %712 = vmatprep.subr.bf16.mxu0 0
        %713 = vmatpush1.bf16.msra.mxu0 %v706
        %714 = vmatprep.subr.bf16.mxu0 0
        %715 = vmatpush1.bf16.msra.mxu0 %v711
        %716 = vmatprep.subr.bf16.mxu0 0
        %717 = vmatpush1.bf16.msra.mxu0 0
        %718 = vmatprep.subr.bf16.mxu0 0
        %719 = vmatpush1.bf16.msra.mxu0 0
        %720 = vmatprep.subr.bf16.mxu0 0
        %721 = vmatpush1.bf16.msra.mxu0 0
        %722 = vmatprep.subr.bf16.mxu0 0
        %723 = vmatpush1.bf16.msra.mxu0 0
        %724 = vmatprep.subr.bf16.mxu0 0
        %725 = vmatpush1.bf16.msra.mxu0 0
        %726 = vmatprep.subr.bf16.mxu0 0
        %727 = vmatpush1.bf16.msra.mxu0 0
        %728 = vmatprep.subr.bf16.mxu0 0
        %729 = vmatpush1.bf16.msra.mxu0 0
        %730 = vmatprep.subr.bf16.mxu0 0
        %731 = vmatpush1.bf16.msra.mxu0 0
        %732 = vmatprep.subr.bf16.mxu0 0
        %733 = vmatpush1.bf16.msra.mxu0 0
        %734 = vmatprep.subr.bf16.mxu0 0
        %735 = vmatpush1.bf16.msra.mxu0 0
        %736 = vmatprep.subr.bf16.mxu0 0
        %737 = vmatpush1.bf16.msra.mxu0 0
        %738 = vmatprep.subr.bf16.mxu0 0
        %739 = vmatpush1.bf16.msra.mxu0 0
        %740 = vmatprep.subr.bf16.mxu0 0
        %741 = vmatpush1.bf16.msra.mxu0 0
        %742 = vmatprep.subr.bf16.mxu0 0
        %743 = vmatpush1.bf16.msra.mxu0 0
        %744 = vmatprep.mubr.bf16.mxu0 0
        %745 = vmatmul.mubr.bf16.gmra.mrb[0].mxu0 %v663
        %v746 = vpop.f32.mrb[0].mxu0
        %v747 = vadd.f32 0.0, %v746
        %v748 = vpop.f32.mrb[0].mxu0
        %v749 = vpop.f32.mrb[0].mxu0
        %v750 = vadd.f32 0.0, %v749
        %v751 = vpop.f32.mrb[0].mxu0
        %752 = vdwg.mxu0
        %v753 = vpack.c.bf16 %v639, %v638
        %v754 = vunpack.c.l.bf16 %v753
        %v755 = vunpack.c.h.bf16 %v753
        %v756 = vsub.f32 %v638, %v754
        %v757 = vsub.f32 %v639, %v755
        %v758 = vpack.c.bf16 %v757, %v756
        %759 = vmatprep.subr.bf16.mxu0 0
        %760 = vmatpush1.bf16.msra.mxu0 %v753
        %761 = vmatprep.subr.bf16.mxu0 0
        %762 = vmatpush1.bf16.msra.mxu0 %v758
        %763 = vmatprep.subr.bf16.mxu0 0
        %764 = vmatpush1.bf16.msra.mxu0 0
        %765 = vmatprep.subr.bf16.mxu0 0
        %766 = vmatpush1.bf16.msra.mxu0 0
        %767 = vmatprep.subr.bf16.mxu0 0
        %768 = vmatpush1.bf16.msra.mxu0 0
        %769 = vmatprep.subr.bf16.mxu0 0
        %770 = vmatpush1.bf16.msra.mxu0 0
        %771 = vmatprep.subr.bf16.mxu0 0
        %772 = vmatpush1.bf16.msra.mxu0 0
        %773 = vmatprep.subr.bf16.mxu0 0
        %774 = vmatpush1.bf16.msra.mxu0 0
        %775 = vmatprep.subr.bf16.mxu0 0
        %776 = vmatpush1.bf16.msra.mxu0 0
        %777 = vmatprep.subr.bf16.mxu0 0
        %778 = vmatpush1.bf16.msra.mxu0 0
        %779 = vmatprep.subr.bf16.mxu0 0
        %780 = vmatpush1.bf16.msra.mxu0 0
        %781 = vmatprep.subr.bf16.mxu0 0
        %782 = vmatpush1.bf16.msra.mxu0 0
        %783 = vmatprep.subr.bf16.mxu0 0
        %784 = vmatpush1.bf16.msra.mxu0 0
        %785 = vmatprep.subr.bf16.mxu0 0
        %786 = vmatpush1.bf16.msra.mxu0 0
        %787 = vmatprep.subr.bf16.mxu0 0
        %788 = vmatpush1.bf16.msra.mxu0 0
        %789 = vmatprep.subr.bf16.mxu0 0
        %790 = vmatpush1.bf16.msra.mxu0 0
        %791 = vmatprep.mubr.bf16.mxu0 0
        %792 = vmatmul.mubr.bf16.gmra.mrb[0].mxu0 %v663
        %v793 = vpop.f32.mrb[0].mxu0
        %v794 = vadd.f32 0.0, %v793
        %v795 = vpop.f32.mrb[0].mxu0
        %v796 = vpop.f32.mrb[0].mxu0
        %v797 = vadd.f32 0.0, %v796
        %v798 = vpop.f32.mrb[0].mxu0
        %799 = vdwg.mxu0
        %v800 = vpack.c.bf16 %v641, %v640
        %v801 = vunpack.c.l.bf16 %v800
        %v802 = vunpack.c.h.bf16 %v800
        %v803 = vsub.f32 %v640, %v801
        %v804 = vsub.f32 %v641, %v802
        %v805 = vpack.c.bf16 %v804, %v803
        %806 = vmatprep.subr.bf16.mxu0 0
        %807 = vmatpush1.bf16.msra.mxu0 %v800
        %808 = vmatprep.subr.bf16.mxu0 0
        %809 = vmatpush1.bf16.msra.mxu0 %v805
        %810 = vmatprep.subr.bf16.mxu0 0
        %811 = vmatpush1.bf16.msra.mxu0 0
        %812 = vmatprep.subr.bf16.mxu0 0
        %813 = vmatpush1.bf16.msra.mxu0 0
        %814 = vmatprep.subr.bf16.mxu0 0
        %815 = vmatpush1.bf16.msra.mxu0 0
        %816 = vmatprep.subr.bf16.mxu0 0
        %817 = vmatpush1.bf16.msra.mxu0 0
        %818 = vmatprep.subr.bf16.mxu0 0
        %819 = vmatpush1.bf16.msra.mxu0 0
        %820 = vmatprep.subr.bf16.mxu0 0
        %821 = vmatpush1.bf16.msra.mxu0 0
        %822 = vmatprep.subr.bf16.mxu0 0
        %823 = vmatpush1.bf16.msra.mxu0 0
        %824 = vmatprep.subr.bf16.mxu0 0
        %825 = vmatpush1.bf16.msra.mxu0 0
        %826 = vmatprep.subr.bf16.mxu0 0
        %827 = vmatpush1.bf16.msra.mxu0 0
        %828 = vmatprep.subr.bf16.mxu0 0
        %829 = vmatpush1.bf16.msra.mxu0 0
        %830 = vmatprep.subr.bf16.mxu0 0
        %831 = vmatpush1.bf16.msra.mxu0 0
        %832 = vmatprep.subr.bf16.mxu0 0
        %833 = vmatpush1.bf16.msra.mxu0 0
        %834 = vmatprep.subr.bf16.mxu0 0
        %835 = vmatpush1.bf16.msra.mxu0 0
        %836 = vmatprep.subr.bf16.mxu0 0
        %837 = vmatpush1.bf16.msra.mxu0 0
        %838 = vmatprep.mubr.bf16.mxu0 0
        %839 = vmatmul.mubr.bf16.gmra.mrb[0].mxu0 %v663
        %v840 = vpop.f32.mrb[0].mxu0
        %v841 = vadd.f32 0.0, %v840
        %v842 = vpop.f32.mrb[0].mxu0
        %v843 = vpop.f32.mrb[0].mxu0
        %v844 = vadd.f32 0.0, %v843
        %v845 = vpop.f32.mrb[0].mxu0
        %846 = vdwg.mxu0
        %v847 = vpack.c.bf16 %v643, %v642
        %v848 = vunpack.c.l.bf16 %v847
        %v849 = vunpack.c.h.bf16 %v847
        %v850 = vsub.f32 %v642, %v848
        %v851 = vsub.f32 %v643, %v849
        %v852 = vpack.c.bf16 %v851, %v850
        %853 = vmatprep.subr.bf16.mxu0 0
        %854 = vmatpush1.bf16.msra.mxu0 %v847
        %855 = vmatprep.subr.bf16.mxu0 0
        %856 = vmatpush1.bf16.msra.mxu0 %v852
        %857 = vmatprep.subr.bf16.mxu0 0
        %858 = vmatpush1.bf16.msra.mxu0 0
        %859 = vmatprep.subr.bf16.mxu0 0
        %860 = vmatpush1.bf16.msra.mxu0 0
        %861 = vmatprep.subr.bf16.mxu0 0
        %862 = vmatpush1.bf16.msra.mxu0 0
        %863 = vmatprep.subr.bf16.mxu0 0
        %864 = vmatpush1.bf16.msra.mxu0 0
        %865 = vmatprep.subr.bf16.mxu0 0
        %866 = vmatpush1.bf16.msra.mxu0 0
        %867 = vmatprep.subr.bf16.mxu0 0
        %868 = vmatpush1.bf16.msra.mxu0 0
        %869 = vmatprep.subr.bf16.mxu0 0
        %870 = vmatpush1.bf16.msra.mxu0 0
        %871 = vmatprep.subr.bf16.mxu0 0
        %872 = vmatpush1.bf16.msra.mxu0 0
        %873 = vmatprep.subr.bf16.mxu0 0
        %874 = vmatpush1.bf16.msra.mxu0 0
        %875 = vmatprep.subr.bf16.mxu0 0
        %876 = vmatpush1.bf16.msra.mxu0 0
        %877 = vmatprep.subr.bf16.mxu0 0
        %878 = vmatpush1.bf16.msra.mxu0 0
        %879 = vmatprep.subr.bf16.mxu0 0
        %880 = vmatpush1.bf16.msra.mxu0 0
        %881 = vmatprep.subr.bf16.mxu0 0
        %882 = vmatpush1.bf16.msra.mxu0 0
        %883 = vmatprep.subr.bf16.mxu0 0
        %884 = vmatpush1.bf16.msra.mxu0 0
        %885 = vmatprep.mubr.bf16.mxu0 0
        %886 = vmatmul.mubr.bf16.gmra.mrb[0].mxu0 %v663
        %v887 = vpop.f32.mrb[0].mxu0
        %v888 = vadd.f32 0.0, %v887
        %v889 = vpop.f32.mrb[0].mxu0
        %v890 = vpop.f32.mrb[0].mxu0
        %v891 = vadd.f32 0.0, %v890
        %v892 = vpop.f32.mrb[0].mxu0
        %893 = vdwg.mxu0
        %v894 = vpack.c.bf16 %v645, %v644
        %v895 = vunpack.c.l.bf16 %v894
        %v896 = vunpack.c.h.bf16 %v894
        %v897 = vsub.f32 %v644, %v895
        %v898 = vsub.f32 %v645, %v896
        %v899 = vpack.c.bf16 %v898, %v897
        %900 = vmatprep.subr.bf16.mxu0 0
        %901 = vmatpush1.bf16.msra.mxu0 %v894
        %902 = vmatprep.subr.bf16.mxu0 0
        %903 = vmatpush1.bf16.msra.mxu0 %v899
        %904 = vmatprep.subr.bf16.mxu0 0
        %905 = vmatpush1.bf16.msra.mxu0 0
        %906 = vmatprep.subr.bf16.mxu0 0
        %907 = vmatpush1.bf16.msra.mxu0 0
        %908 = vmatprep.subr.bf16.mxu0 0
        %909 = vmatpush1.bf16.msra.mxu0 0
        %910 = vmatprep.subr.bf16.mxu0 0
        %911 = vmatpush1.bf16.msra.mxu0 0
        %912 = vmatprep.subr.bf16.mxu0 0
        %913 = vmatpush1.bf16.msra.mxu0 0
        %914 = vmatprep.subr.bf16.mxu0 0
        %915 = vmatpush1.bf16.msra.mxu0 0
        %916 = vmatprep.subr.bf16.mxu0 0
        %917 = vmatpush1.bf16.msra.mxu0 0
        %918 = vmatprep.subr.bf16.mxu0 0
        %919 = vmatpush1.bf16.msra.mxu0 0
        %920 = vmatprep.subr.bf16.mxu0 0
        %921 = vmatpush1.bf16.msra.mxu0 0
        %922 = vmatprep.subr.bf16.mxu0 0
        %923 = vmatpush1.bf16.msra.mxu0 0
        %924 = vmatprep.subr.bf16.mxu0 0
        %925 = vmatpush1.bf16.msra.mxu0 0
        %926 = vmatprep.subr.bf16.mxu0 0
        %927 = vmatpush1.bf16.msra.mxu0 0
        %928 = vmatprep.subr.bf16.mxu0 0
        %929 = vmatpush1.bf16.msra.mxu0 0
        %930 = vmatprep.subr.bf16.mxu0 0
        %931 = vmatpush1.bf16.msra.mxu0 0
        %932 = vmatprep.mubr.bf16.mxu0 0
        %933 = vmatmul.mubr.bf16.gmra.mrb[0].mxu0 %v663
        %v934 = vpop.f32.mrb[0].mxu0
        %v935 = vadd.f32 0.0, %v934
        %v936 = vpop.f32.mrb[0].mxu0
        %v937 = vpop.f32.mrb[0].mxu0
        %v938 = vadd.f32 0.0, %v937
        %v939 = vpop.f32.mrb[0].mxu0
        %940 = vdwg.mxu0
        %v941 = vpack.c.bf16 %v647, %v646
        %v942 = vunpack.c.l.bf16 %v941
        %v943 = vunpack.c.h.bf16 %v941
        %v944 = vsub.f32 %v646, %v942
        %v945 = vsub.f32 %v647, %v943
        %v946 = vpack.c.bf16 %v945, %v944
        %947 = vmatprep.subr.bf16.mxu0 0
        %948 = vmatpush1.bf16.msra.mxu0 %v941
        %949 = vmatprep.subr.bf16.mxu0 0
        %950 = vmatpush1.bf16.msra.mxu0 %v946
        %951 = vmatprep.subr.bf16.mxu0 0
        %952 = vmatpush1.bf16.msra.mxu0 0
        %953 = vmatprep.subr.bf16.mxu0 0
        %954 = vmatpush1.bf16.msra.mxu0 0
        %955 = vmatprep.subr.bf16.mxu0 0
        %956 = vmatpush1.bf16.msra.mxu0 0
        %957 = vmatprep.subr.bf16.mxu0 0
        %958 = vmatpush1.bf16.msra.mxu0 0
        %959 = vmatprep.subr.bf16.mxu0 0
        %960 = vmatpush1.bf16.msra.mxu0 0
        %961 = vmatprep.subr.bf16.mxu0 0
        %962 = vmatpush1.bf16.msra.mxu0 0
        %963 = vmatprep.subr.bf16.mxu0 0
        %964 = vmatpush1.bf16.msra.mxu0 0
        %965 = vmatprep.subr.bf16.mxu0 0
        %966 = vmatpush1.bf16.msra.mxu0 0
        %967 = vmatprep.subr.bf16.mxu0 0
        %968 = vmatpush1.bf16.msra.mxu0 0
        %969 = vmatprep.subr.bf16.mxu0 0
        %970 = vmatpush1.bf16.msra.mxu0 0
        %971 = vmatprep.subr.bf16.mxu0 0
        %972 = vmatpush1.bf16.msra.mxu0 0
        %973 = vmatprep.subr.bf16.mxu0 0
        %974 = vmatpush1.bf16.msra.mxu0 0
        %975 = vmatprep.subr.bf16.mxu0 0
        %976 = vmatpush1.bf16.msra.mxu0 0
        %977 = vmatprep.subr.bf16.mxu0 0
        %978 = vmatpush1.bf16.msra.mxu0 0
        %979 = vmatprep.mubr.bf16.mxu0 0
        %980 = vmatmul.mubr.bf16.gmra.mrb[0].mxu0 %v663
        %v981 = vpop.f32.mrb[0].mxu0
        %v982 = vadd.f32 0.0, %v981
        %v983 = vpop.f32.mrb[0].mxu0
        %v984 = vpop.f32.mrb[0].mxu0
        %v985 = vadd.f32 0.0, %v984
        %v986 = vpop.f32.mrb[0].mxu0
        %987 = vdwg.mxu0
        %v988 = vpack.c.bf16 %v649, %v648
        %v989 = vunpack.c.l.bf16 %v988
        %v990 = vunpack.c.h.bf16 %v988
        %v991 = vsub.f32 %v648, %v989
        %v992 = vsub.f32 %v649, %v990
        %v993 = vpack.c.bf16 %v992, %v991
        %994 = vmatprep.subr.bf16.mxu0 0
        %995 = vmatpush1.bf16.msra.mxu0 %v988
        %996 = vmatprep.subr.bf16.mxu0 0
        %997 = vmatpush1.bf16.msra.mxu0 %v993
        %998 = vmatprep.subr.bf16.mxu0 0
        %999 = vmatpush1.bf16.msra.mxu0 0
        %1000 = vmatprep.subr.bf16.mxu0 0
        %1001 = vmatpush1.bf16.msra.mxu0 0
        %1002 = vmatprep.subr.bf16.mxu0 0
        %1003 = vmatpush1.bf16.msra.mxu0 0
        %1004 = vmatprep.subr.bf16.mxu0 0
        %1005 = vmatpush1.bf16.msra.mxu0 0
        %1006 = vmatprep.subr.bf16.mxu0 0
        %1007 = vmatpush1.bf16.msra.mxu0 0
        %1008 = vmatprep.subr.bf16.mxu0 0
        %1009 = vmatpush1.bf16.msra.mxu0 0
        %1010 = vmatprep.subr.bf16.mxu0 0
        %1011 = vmatpush1.bf16.msra.mxu0 0
        %1012 = vmatprep.subr.bf16.mxu0 0
        %1013 = vmatpush1.bf16.msra.mxu0 0
        %1014 = vmatprep.subr.bf16.mxu0 0
        %1015 = vmatpush1.bf16.msra.mxu0 0
        %1016 = vmatprep.subr.bf16.mxu0 0
        %1017 = vmatpush1.bf16.msra.mxu0 0
        %1018 = vmatprep.subr.bf16.mxu0 0
        %1019 = vmatpush1.bf16.msra.mxu0 0
        %1020 = vmatprep.subr.bf16.mxu0 0
        %1021 = vmatpush1.bf16.msra.mxu0 0
        %1022 = vmatprep.subr.bf16.mxu0 0
        %1023 = vmatpush1.bf16.msra.mxu0 0
        %1024 = vmatprep.subr.bf16.mxu0 0
        %1025 = vmatpush1.bf16.msra.mxu0 0
        %1026 = vmatprep.mubr.bf16.mxu0 0
        %1027 = vmatmul.mubr.bf16.gmra.mrb[0].mxu0 %v663
        %v1028 = vpop.f32.mrb[0].mxu0
        %v1029 = vadd.f32 0.0, %v1028
        %v1030 = vpop.f32.mrb[0].mxu0
        %v1031 = vpop.f32.mrb[0].mxu0
        %v1032 = vadd.f32 0.0, %v1031
        %v1033 = vpop.f32.mrb[0].mxu0
        %1034 = vdwg.mxu0
        %v1035 = vmul.f32 %v700, %v700
        %v1036 = vmul.f32 %v703, %v703
        %v1037 = vmul.f32 %v1035, 0.012345679
        %v1038 = vmul.f32 %v1036, 0.012345679
        %v1039 = vsub.f32 %v747, %v1037
        %v1040 = vsub.f32 %v750, %v1038
        %v1041 = vmax.f32 %v1039, 0.0
        %v1042 = vmax.f32 %v1040, 0.0
        %v1043 = vmul.f32 %v794, %v700
        %v1044 = vmul.f32 %v797, %v703
        %v1045 = vmul.f32 %v1043, 0.012345679
        %v1046 = vmul.f32 %v1044, 0.012345679
        %v1047 = vsub.f32 %v888, %v1045
        %v1048 = vsub.f32 %v891, %v1046
        %v1049 = vmul.f32 %v794, %v794
        %v1050 = vmul.f32 %v797, %v797
        %v1051 = vmul.f32 %v1049, 0.012345679
        %v1052 = vmul.f32 %v1050, 0.012345679
        %v1053 = vsub.f32 %v841, %v1051
        %v1054 = vsub.f32 %v844, %v1052
        %v1055 = vmax.f32 %v1053, 0.0
        %v1056 = vmax.f32 %v1054, 0.0
        %v1057 = vmul.f32 %v1047, %v1047
        %v1058 = vmul.f32 %v1048, %v1048
        %v1059 = vmul.f32 %v1055, %v1041
        %v1060 = vmul.f32 %v1056, %v1042
        %v1061 = vadd.f32 %v1059, 1e-05
        %v1062 = vadd.f32 %v1060, 1e-05
        %v1063 = vrcp.pop %v1061
        %v1064 = vrcp.pop %v1062
        %v1065 = vmul.f32 %v1057, %v1063
        %v1066 = vmul.f32 %v1058, %v1064
        %v1067 = vsub.f32 1.0, %v1065
        %v1068 = vsub.f32 1.0, %v1066
        %v1069 = vmul.f32 %v935, %v700
        %v1070 = vmul.f32 %v938, %v703
        %v1071 = vmul.f32 %v1069, 0.012345679
        %v1072 = vmul.f32 %v1070, 0.012345679
        %v1073 = vsub.f32 %v1029, %v1071
        %v1074 = vsub.f32 %v1032, %v1072
        %v1075 = vmul.f32 %v935, %v935
        %v1076 = vmul.f32 %v938, %v938
        %v1077 = vmul.f32 %v1075, 0.012345679
        %v1078 = vmul.f32 %v1076, 0.012345679
        %v1079 = vsub.f32 %v982, %v1077
        %v1080 = vsub.f32 %v985, %v1078
        %v1081 = vmax.f32 %v1079, 0.0
        %v1082 = vmax.f32 %v1080, 0.0
        %v1083 = vmul.f32 %v1073, %v1073
        %v1084 = vmul.f32 %v1074, %v1074
        %v1085 = vmul.f32 %v1081, %v1041
        %v1086 = vmul.f32 %v1082, %v1042
        %v1087 = vadd.f32 %v1085, 1e-05
        %v1088 = vadd.f32 %v1086, 1e-05
        %v1089 = vrcp.pop %v1087
        %v1090 = vrcp.pop %v1088
        %v1091 = vmul.f32 %v1083, %v1089
        %v1092 = vmul.f32 %v1084, %v1090
        %v1093 = vsub.f32 1.0, %v1091
        %v1094 = vsub.f32 1.0, %v1092
        %v1095 = vadd.f32 %v1067, %v1093
        %v1096 = vadd.f32 %v1068, %v1094
        %v1097 = vmul.f32 %v1095, 0.5
        %v1098 = vmul.f32 %v1096, 0.5
        %v1099 = vsel %vm424, %v1097, 0.0
        %v1100 = vsel %vm424, %v1098, 0.0
        %v1101 = vadd.f32 %v1099, %v1100
        %v1102 = vrot.slane %v1101, 4
        %v1103 = vadd.f32 %v1101, %v1102
        %v1104 = vrot.slane %v1103, 2
        %v1105 = vadd.f32 %v1103, %v1104
        %v1106 = vrot.slane %v1105, 1
        %v1107 = vadd.f32 %v1105, %v1106
        %vm1108 = vcmask 122880
        %v1109 = vsel %vm1108, %v1107, 0.0
        %1110 = vadd.xlane.f32.xlu0 %v1109
        %v1111 = vpop.xlane.xlu0 %1110
        %v1112 = vrot.slane %v1111, 4
        %v1113 = vadd.f32 %v1111, %v1112
        %v1114 = vrot.slane %v1113, 2
        %v1115 = vadd.f32 %v1113, %v1114
        %v1116 = vrot.slane %v1115, 1
        %v1117 = vadd.f32 %v1115, %v1116
        %s1118 = vtos %v1117
        %v1119 = vstv %s1118
        %1120 = vst [vmem:[%s348] sm:$0xff] %v1119
        %s1121 = sand.u32 %s154, 1
        %s1122 = scalar_lea.sflag [#allocation4], %s1121
        %s1123 = sand.u32 %s154, 1
        %s1124 = smul.addr %s1123, 8
        %s1125 = scalar_lea.vmem [#allocation11], %s1124
        // Predicated region
        $region61: #{tpu_custom_call.1} parent=39 // pred_check
          %p1126 = pneg %p164
        $region62: #{tpu_custom_call.1} parent=39 // pred_check_branch
          %1128 = sbr.rel (%p1126) target = $region64
        $region63: #{tpu_custom_call.1} parent=39 // pred_region
          %s1130 = ssub.s32 128, 128
          %1131 = vsyncadd %s1122, %s1130
          %s1132 = smul.addr %s26, 128
          %s1133 = scalar_lea.hbm %s5, %s1132
          %s1135 = sshll.u32 %s1125, 4
          %s1136 = int_to_ptr.vmem [resolvable:$true] %s1135
          %1138 = dma.vmem_to_hbm [thread:$0]  %s1136, 128, %s1133, %s1122
        $region64: #{tpu_custom_call.1} parent=39 // pred_fallthru
          _
      $region40: #{tpu_custom_call.1} parent=5 // pred_fallthru
        _
      %p1139 = scmp.le.s32.totalorder 2, %s21
      // Predicated region
      $region65: #{tpu_custom_call.1} parent=5 // pred_check
        %p1140 = pneg %p1139
      $region66: #{tpu_custom_call.1} parent=5 // pred_check_branch
        %1142 = sbr.rel (%p1140) target = $region68
      $region67: #{tpu_custom_call.1} parent=5 // pred_region
        %s1143 = ssub.s32 %s21, 2
        // Predicated region
        $region69: #{tpu_custom_call.1} parent=67 // pred_check
          %p1144 = pneg %p170
        $region70: #{tpu_custom_call.1} parent=67 // pred_check_branch
          %1146 = sbr.rel (%p1144) target = $region72
        $region71: #{tpu_custom_call.1} parent=67 // pred_region
          %s1147 = sand.u32 %s155, 1
          %s1148 = scalar_lea.sflag [#allocation4], %s1147
          %s1149 = sand.u32 %s155, 1
          %s1150 = smul.addr %s1149, 8
          %s1151 = scalar_lea.vmem [#allocation11], %s1150
          %1152 = dma.done %s1148, 128
        $region72: #{tpu_custom_call.1} parent=67 // pred_fallthru
          _
      $region68: #{tpu_custom_call.1} parent=5 // pred_fallthru
        _
    $region6: #{tpu_custom_call.1} parent=1 // loop_footer
      %s25 = sadd.s32 1, %s21
    $region7: #{tpu_custom_call.1} parent=1 // loop_footer_branch
      %20 = sbr.rel target = $region3
    $region8: #{tpu_custom_call.1} parent=1 // loop_exit
      _
    %1153 = vsyncpa [#allocation3], 1
    %s1154 = scalar_lea.sflag [#allocation3], 1
    %1155 = vsyncpa %s1154, 1
    %1156 = vsyncpa [#allocation6], 1
    %s1157 = scalar_lea.sflag [#allocation6], 1
    %1158 = vsyncpa %s1157, 1
    %1159 = vsyncpa [#allocation9], 1
    %1160 = vsyncpa [#allocation4], 1
    %s1161 = scalar_lea.sflag [#allocation4], 1
    %1162 = vsyncpa %s1161, 1

</llo_original>
